<compile_context>
chip_gen: v7x
topology: tpu7x:2x2x1
jax: 0.10.0
libtpu: 0.0.40
codegen_flags: <defaults>
</compile_context>

<pallas_src>
import functools

import jax
import jax.numpy as jnp
from jax import lax
from jax.experimental import pallas as pl
from jax.experimental.pallas import tpu as pltpu


LANES = 128


# ---------------------------------------------------------------------------
# Pallas kernel: depthwise KxK conv (stride 1, 'same') + per-channel bias
# ---------------------------------------------------------------------------
def _dw_conv_kernel(x_hbm, w_ref, b_ref, o_ref, xbuf, sem, *, K, TH, W, TC):
    # x_hbm : (N, H+K-1, Wp, Cp)  padded input, left in HBM (pl.ANY)
    # w_ref : (K, K, TC)          merged depthwise weights (f32, channels last)
    # b_ref : (1, TC)             merged per-channel bias (f32)
    # o_ref : (1, TH, W, TC)      output row tile
    # xbuf  : (1, TH+K-1, Wp, TC) VMEM scratch for the halo'd input rows
    THh = TH + K - 1
    Wp = xbuf.shape[2]
    n = pl.program_id(0)
    c = pl.program_id(1)
    h = pl.program_id(2)

    # Manual halo DMA: rows [h*TH, h*TH + TH + K - 1) of the padded input for this
    # channel tile.  Started first so the small prep below overlaps the transfer.
    row0 = h * TH
    c0 = pl.multiple_of(c * TC, TC)
    cp = pltpu.make_async_copy(
        x_hbm.at[pl.ds(n, 1), pl.ds(row0, THh), pl.ds(0, Wp), pl.ds(c0, TC)],
        xbuf,
        sem.at[0],
    )
    cp.start()

    # Hoisted out of the row loop: per-tap weight vectors (multiplied in the input's
    # native dtype so bf16 inputs use the bf16 VALU; accumulation stays f32) and the
    # bias row, folded into the accumulator init below.
    w_taps = [[w_ref[dy, dx, :].astype(xbuf.dtype) for dx in range(K)]
              for dy in range(K)]
    bias_row = jnp.broadcast_to(
        b_ref[...].astype(jnp.float32).reshape(1, 1, TC), (1, W, TC))

    cp.wait()

    def row_body(y, carry):
        # Two partial accumulators shorten the serial add chain on the VALU.
        acc0 = bias_row
        acc1 = jnp.zeros((1, W, TC), jnp.float32)
        t = 0
        for dy in range(K):                      # static unroll: K*K taps
            for dx in range(K):
                # read each tap directly from VMEM (no big 'rows' value -> no spills)
                xs = xbuf[0, pl.ds(y + dy, 1), pl.ds(dx, W), :]       # (1, W, TC)
                prod = (xs * w_taps[dy][dx]).astype(jnp.float32)
                if t % 2 == 0:
                    acc0 = acc0 + prod
                else:
                    acc1 = acc1 + prod
                t += 1
        o_ref[0, pl.ds(y, 1)] = (acc0 + acc1).astype(o_ref.dtype)
        return carry

    lax.fori_loop(0, TH, row_body, 0)


def _vmem_budget_bytes():
    cap = 64 << 20
    try:
        info = pltpu.get_tpu_info()
        cap = int(getattr(info, "vmem_capacity_bytes", cap))
    except Exception:
        pass  # conservative (v7x-sized) fallback
    return max(32 << 20, min(cap * 3 // 4, 96 << 20))


def _pick_row_tile(H, K, Wp, W, TC, in_dsize, out_dsize, budget):
    """Largest divisor of H whose per-step blocks fit in ~budget/3 of VMEM."""
    target = max(1 << 20, budget // 3)
    for d in range(H, 0, -1):
        if H % d:
            continue
        need = (d + K - 1) * Wp * TC * in_dsize + 2 * d * W * TC * out_dsize
        if need <= target:
            return d
    return 1


def dilated_reparam_block(x_nchw, merged_w, merged_b):
    """x_nchw: (N, C, H, W); merged_w: (C, 1, K, K) depthwise weight; merged_b: (C,)."""
    N, C, H, W = x_nchw.shape
    K = merged_w.shape[-1]
    assert K % 2 == 1, "merged kernel size must be odd for 'same' padding"
    P = K // 2
    dtype = x_nchw.dtype
    dsize = int(jnp.dtype(dtype).itemsize)

    # Lane-dense channel tiles: zero-extend C to a multiple of 128 so output stores are
    # full-lane, unmasked vst's.  The 'same' halo (H and W) and the lane pad are folded
    # into the single NCHW->NHWC layout pass below; Wp is rounded so the VMEM scratch's
    # sublane dim is a multiple of 8.
    TC = LANES
    Cp = ((C + TC - 1) // TC) * TC
    Wp = ((W + 2 * P + 7) // 8) * 8

    x = jnp.transpose(x_nchw, (0, 2, 3, 1))
    x = jnp.pad(x, ((0, 0), (P, P), (P, Wp - W - P), (0, Cp - C)))

    # merged weights/bias stay f32 end-to-end (no dtype round trip on the host)
    w = jnp.pad(jnp.transpose(merged_w[:, 0], (1, 2, 0)).astype(jnp.float32),
                ((0, 0), (0, 0), (0, Cp - C)))
    b = jnp.pad(merged_b.astype(jnp.float32), (0, Cp - C)).reshape(1, Cp)

    budget = _vmem_budget_bytes()
    TH = _pick_row_tile(H, K, Wp, W, TC, dsize, dsize, budget)
    THh = TH + K - 1
    n_h = H // TH
    n_c = Cp // TC
    grid = (N, n_c, n_h)

    cost = pl.CostEstimate(
        flops=2 * N * H * W * Cp * K * K,
        transcendentals=0,
        bytes_accessed=int(x.size * dsize + N * H * W * Cp * dsize
                           + w.size * 4 + b.size * 4),
    )

    kernel = functools.partial(_dw_conv_kernel, K=K, TH=TH, W=W, TC=TC)
    out = pl.pallas_call(
        kernel,
        out_shape=jax.ShapeDtypeStruct((N, H, W, Cp), dtype),
        grid_spec=pltpu.PrefetchScalarGridSpec(
            num_scalar_prefetch=0,
            grid=grid,
            in_specs=[
                pl.BlockSpec(memory_space=pl.ANY),                    # padded input, HBM
                pl.BlockSpec((K, K, TC), lambda n, c, h: (0, 0, c)),  # weights
                pl.BlockSpec((1, TC), lambda n, c, h: (0, c)),        # bias
            ],
            out_specs=pl.BlockSpec((1, TH, W, TC), lambda n, c, h: (n, h, 0, c)),
            scratch_shapes=[
                pltpu.VMEM((1, THh, Wp, TC), dtype),
                pltpu.SemaphoreType.DMA((1,)),
            ],
        ),
        compiler_params=pltpu.CompilerParams(
            dimension_semantics=("parallel", "parallel", "parallel"),
            vmem_limit_bytes=budget,
        ),
        cost_estimate=cost,
    )(x, w, b)

    # back to the module's NCHW convention, dropping the lane padding
    return jnp.transpose(out[..., :C], (0, 3, 1, 2))


# ---------------------------------------------------------------------------
# Host-side exact reparameterization (same math as the module's merge_dilated_branches)
# ---------------------------------------------------------------------------
def _fuse_conv_bn(w, gamma, beta, mean, var, eps=1e-5):
    # w: (C, 1, k, k) depthwise weight; eval-mode BN folded into conv weight + bias
    t = gamma / jnp.sqrt(var + eps)
    return w * t[:, None, None, None], beta - mean * t


def _embed_dilated(w_small, r, K):
    # place a k x k kernel with dilation r, centered inside a K x K dense kernel (exact)
    C, _, k, _ = w_small.shape
    eq = r * (k - 1) + 1
    off = (K - eq) // 2
    idx = off + r * jnp.arange(k)
    big = jnp.zeros((C, 1, K, K), w_small.dtype)
    return big.at[:, :, idx[:, None], idx[None, :]].set(w_small)


def merge_dilated_branches(params, kernel_sizes, dilates, K, eps=1e-5):
    w, b = _fuse_conv_bn(params["lk_w"], *params["origin_bn"], eps=eps)
    for k, r in zip(kernel_sizes, dilates):
        bw, bb = _fuse_conv_bn(params[f"dil_w_{k}_{r}"], *params[f"dil_bn_{k}_{r}"], eps=eps)
        w = w + _embed_dilated(bw, r, K)
        b = b + bb
    return w, b


# ---------------------------------------------------------------------------
# Pure-JAX multi-branch reference (matches the PyTorch forward, eval-mode BN)
# ---------------------------------------------------------------------------
def _dw_conv_ref(x, w, r):
    k = w.shape[-1]
    p = (r * (k - 1) + 1) // 2
    return lax.conv_general_dilated(
        x, w, window_strides=(1, 1), padding=[(p, p), (p, p)],
        rhs_dilation=(r, r), feature_group_count=x.shape[1],
        dimension_numbers=("NCHW", "OIHW", "NCHW"))


def _bn_ref(x, gamma, beta, mean, var, eps=1e-5):
    s = (gamma / jnp.sqrt(var + eps))[None, :, None, None]
    return (x - mean[None, :, None, None]) * s + beta[None, :, None, None]


def dilated_reparam_ref(x, params, kernel_sizes, dilates, eps=1e-5):
    out = _bn_ref(_dw_conv_ref(x, params["lk_w"], 1), *params["origin_bn"], eps=eps)
    for k, r in zip(kernel_sizes, dilates):
        out = out + _bn_ref(_dw_conv_ref(x, params[f"dil_w_{k}_{r}"], r),
                            *params[f"dil_bn_{k}_{r}"], eps=eps)
    return out


if __name__ == "__main__":
    key = jax.random.PRNGKey(0)
    N, C, H, W = 2, 4, 16, 16
    K = 7                                   # kernel_size=7 -> branches (5,1), (3,2), (3,3)
    kernel_sizes, dilates = [5, 3, 3], [1, 2, 3]

    def bn_params(k_):
        k1, k2, k3, k4 = jax.random.split(k_, 4)
        gamma = jax.random.uniform(k1, (C,), jnp.float32, 0.5, 1.5)
        beta = 0.1 * jax.random.normal(k2, (C,), jnp.float32)
        mean = 0.1 * jax.random.normal(k3, (C,), jnp.float32)
        var = jax.random.uniform(k4, (C,), jnp.float32, 0.5, 1.5)
        return (gamma, beta, mean, var)

    keys = jax.random.split(key, 3 + 2 * len(kernel_sizes))
    x = jax.random.normal(keys[0], (N, C, H, W), jnp.float32)
    params = {
        "lk_w": 0.1 * jax.random.normal(keys[1], (C, 1, K, K), jnp.float32),
        "origin_bn": bn_params(keys[2]),
    }
    for i, (k, r) in enumerate(zip(kernel_sizes, dilates)):
        params[f"dil_w_{k}_{r}"] = 0.1 * jax.random.normal(
            keys[3 + 2 * i], (C, 1, k, k), jnp.float32)
        params[f"dil_bn_{k}_{r}"] = bn_params(keys[4 + 2 * i])

    # exact reparameterization on host, one depthwise Pallas conv on device
    merged_w, merged_b = merge_dilated_branches(params, kernel_sizes, dilates, K)
    out = dilated_reparam_block(x, merged_w, merged_b)
    out = jax.block_until_ready(out)

    ref = dilated_reparam_ref(x, params, kernel_sizes, dilates)
    assert out.shape == (N, C, H, W)
    err = float(jnp.max(jnp.abs(out - ref)))
    assert jnp.allclose(out, ref, atol=1e-4, rtol=1e-4), f"mismatch vs reference: {err}"

    print("KERNEL_OK")
</pallas_src>

<mosaic_0001>
module attributes {stable_mosaic.version = 11 : i64} {
  func.func @_dw_conv_kernel(%arg0: i32, %arg1: i32, %arg2: i32, %arg3: memref<2x22x24x128xf32, #tpu.memory_space<any>>, %arg4: memref<7x7x128xf32, #tpu.memory_space<vmem>>, %arg5: memref<1x128xf32, #tpu.memory_space<vmem>>, %arg6: memref<1x16x16x128xf32, #tpu.memory_space<vmem>>, %arg7: memref<1x22x24x128xf32, #tpu.memory_space<vmem>>, %arg8: memref<1x!tpu.dma_semaphore, #tpu.memory_space<semaphore_mem>>) attributes {dimension_semantics = [#tpu.dimension_semantics<parallel>, #tpu.dimension_semantics<parallel>, #tpu.dimension_semantics<parallel>], iteration_bounds = array<i64: 2, 1, 1>, scalar_prefetch = 0 : i64, scratch_operands = 2 : i64, tpu.core_type = #tpu.core_type<tc>, window_params = [{}, {transform_indices = @transform_1, window_bounds = array<i64: 7, 7, 128>}, {transform_indices = @transform_2, window_bounds = array<i64: 1, 128>}, {transform_indices = @transform_3, window_bounds = array<i64: 1, 16, 16, 128>}]} {
    %c16_i32 = arith.constant 16 : i32
    %0 = arith.muli %arg2, %c16_i32 : i32
    %c128_i32 = arith.constant 128 : i32
    %1 = arith.muli %arg1, %c128_i32 : i32
    %2 = tpu.assume_multiple %1, 128 : i32
    %c0_i32 = arith.constant 0 : i32
    %c0_i32_0 = arith.constant 0 : i32
    %3 = tpu.memref_slice %arg3[%arg0, %0, %c0_i32_0, %2] : memref<2x22x24x128xf32, #tpu.memory_space<any>> -> memref<1x22x24x128xf32, #tpu.memory_space<any>>
    %4 = tpu.memref_slice %arg8[%c0_i32] : memref<1x!tpu.dma_semaphore, #tpu.memory_space<semaphore_mem>> -> memref<1x!tpu.dma_semaphore, #tpu.memory_space<semaphore_mem>>
    %5 = tpu.memref_squeeze %4 : memref<1x!tpu.dma_semaphore, #tpu.memory_space<semaphore_mem>> -> memref<!tpu.dma_semaphore, #tpu.memory_space<semaphore_mem>>
    tpu.enqueue_dma source(%3 : memref<1x22x24x128xf32, #tpu.memory_space<any>>) target(%arg7 : memref<1x22x24x128xf32, #tpu.memory_space<vmem>>) target_semaphore(%5 : memref<!tpu.dma_semaphore, #tpu.memory_space<semaphore_mem>>)
    %c0 = arith.constant 0 : index
    %c0_1 = arith.constant 0 : index
    %c0_2 = arith.constant 0 : index
    %6 = vector.load %arg4[%c0, %c0_1, %c0_2] : memref<7x7x128xf32, #tpu.memory_space<vmem>>, vector<1x1x128xf32>
    %7 = vector.shape_cast %6 : vector<1x1x128xf32> to vector<128xf32>
    %c0_3 = arith.constant 0 : index
    %c1 = arith.constant 1 : index
    %c0_4 = arith.constant 0 : index
    %8 = vector.load %arg4[%c0_3, %c1, %c0_4] : memref<7x7x128xf32, #tpu.memory_space<vmem>>, vector<1x1x128xf32>
    %9 = vector.shape_cast %8 : vector<1x1x128xf32> to vector<128xf32>
    %c0_5 = arith.constant 0 : index
    %c2 = arith.constant 2 : index
    %c0_6 = arith.constant 0 : index
    %10 = vector.load %arg4[%c0_5, %c2, %c0_6] : memref<7x7x128xf32, #tpu.memory_space<vmem>>, vector<1x1x128xf32>
    %11 = vector.shape_cast %10 : vector<1x1x128xf32> to vector<128xf32>
    %c0_7 = arith.constant 0 : index
    %c3 = arith.constant 3 : index
    %c0_8 = arith.constant 0 : index
    %12 = vector.load %arg4[%c0_7, %c3, %c0_8] : memref<7x7x128xf32, #tpu.memory_space<vmem>>, vector<1x1x128xf32>
    %13 = vector.shape_cast %12 : vector<1x1x128xf32> to vector<128xf32>
    %c0_9 = arith.constant 0 : index
    %c4 = arith.constant 4 : index
    %c0_10 = arith.constant 0 : index
    %14 = vector.load %arg4[%c0_9, %c4, %c0_10] : memref<7x7x128xf32, #tpu.memory_space<vmem>>, vector<1x1x128xf32>
    %15 = vector.shape_cast %14 : vector<1x1x128xf32> to vector<128xf32>
    %c0_11 = arith.constant 0 : index
    %c5 = arith.constant 5 : index
    %c0_12 = arith.constant 0 : index
    %16 = vector.load %arg4[%c0_11, %c5, %c0_12] : memref<7x7x128xf32, #tpu.memory_space<vmem>>, vector<1x1x128xf32>
    %17 = vector.shape_cast %16 : vector<1x1x128xf32> to vector<128xf32>
    %c0_13 = arith.constant 0 : index
    %c6 = arith.constant 6 : index
    %c0_14 = arith.constant 0 : index
    %18 = vector.load %arg4[%c0_13, %c6, %c0_14] : memref<7x7x128xf32, #tpu.memory_space<vmem>>, vector<1x1x128xf32>
    %19 = vector.shape_cast %18 : vector<1x1x128xf32> to vector<128xf32>
    %c1_15 = arith.constant 1 : index
    %c0_16 = arith.constant 0 : index
    %c0_17 = arith.constant 0 : index
    %20 = vector.load %arg4[%c1_15, %c0_16, %c0_17] : memref<7x7x128xf32, #tpu.memory_space<vmem>>, vector<1x1x128xf32>
    %21 = vector.shape_cast %20 : vector<1x1x128xf32> to vector<128xf32>
    %c1_18 = arith.constant 1 : index
    %c1_19 = arith.constant 1 : index
    %c0_20 = arith.constant 0 : index
    %22 = vector.load %arg4[%c1_18, %c1_19, %c0_20] : memref<7x7x128xf32, #tpu.memory_space<vmem>>, vector<1x1x128xf32>
    %23 = vector.shape_cast %22 : vector<1x1x128xf32> to vector<128xf32>
    %c1_21 = arith.constant 1 : index
    %c2_22 = arith.constant 2 : index
    %c0_23 = arith.constant 0 : index
    %24 = vector.load %arg4[%c1_21, %c2_22, %c0_23] : memref<7x7x128xf32, #tpu.memory_space<vmem>>, vector<1x1x128xf32>
    %25 = vector.shape_cast %24 : vector<1x1x128xf32> to vector<128xf32>
    %c1_24 = arith.constant 1 : index
    %c3_25 = arith.constant 3 : index
    %c0_26 = arith.constant 0 : index
    %26 = vector.load %arg4[%c1_24, %c3_25, %c0_26] : memref<7x7x128xf32, #tpu.memory_space<vmem>>, vector<1x1x128xf32>
    %27 = vector.shape_cast %26 : vector<1x1x128xf32> to vector<128xf32>
    %c1_27 = arith.constant 1 : index
    %c4_28 = arith.constant 4 : index
    %c0_29 = arith.constant 0 : index
    %28 = vector.load %arg4[%c1_27, %c4_28, %c0_29] : memref<7x7x128xf32, #tpu.memory_space<vmem>>, vector<1x1x128xf32>
    %29 = vector.shape_cast %28 : vector<1x1x128xf32> to vector<128xf32>
    %c1_30 = arith.constant 1 : index
    %c5_31 = arith.constant 5 : index
    %c0_32 = arith.constant 0 : index
    %30 = vector.load %arg4[%c1_30, %c5_31, %c0_32] : memref<7x7x128xf32, #tpu.memory_space<vmem>>, vector<1x1x128xf32>
    %31 = vector.shape_cast %30 : vector<1x1x128xf32> to vector<128xf32>
    %c1_33 = arith.constant 1 : index
    %c6_34 = arith.constant 6 : index
    %c0_35 = arith.constant 0 : index
    %32 = vector.load %arg4[%c1_33, %c6_34, %c0_35] : memref<7x7x128xf32, #tpu.memory_space<vmem>>, vector<1x1x128xf32>
    %33 = vector.shape_cast %32 : vector<1x1x128xf32> to vector<128xf32>
    %c2_36 = arith.constant 2 : index
    %c0_37 = arith.constant 0 : index
    %c0_38 = arith.constant 0 : index
    %34 = vector.load %arg4[%c2_36, %c0_37, %c0_38] : memref<7x7x128xf32, #tpu.memory_space<vmem>>, vector<1x1x128xf32>
    %35 = vector.shape_cast %34 : vector<1x1x128xf32> to vector<128xf32>
    %c2_39 = arith.constant 2 : index
    %c1_40 = arith.constant 1 : index
    %c0_41 = arith.constant 0 : index
    %36 = vector.load %arg4[%c2_39, %c1_40, %c0_41] : memref<7x7x128xf32, #tpu.memory_space<vmem>>, vector<1x1x128xf32>
    %37 = vector.shape_cast %36 : vector<1x1x128xf32> to vector<128xf32>
    %c2_42 = arith.constant 2 : index
    %c2_43 = arith.constant 2 : index
    %c0_44 = arith.constant 0 : index
    %38 = vector.load %arg4[%c2_42, %c2_43, %c0_44] : memref<7x7x128xf32, #tpu.memory_space<vmem>>, vector<1x1x128xf32>
    %39 = vector.shape_cast %38 : vector<1x1x128xf32> to vector<128xf32>
    %c2_45 = arith.constant 2 : index
    %c3_46 = arith.constant 3 : index
    %c0_47 = arith.constant 0 : index
    %40 = vector.load %arg4[%c2_45, %c3_46, %c0_47] : memref<7x7x128xf32, #tpu.memory_space<vmem>>, vector<1x1x128xf32>
    %41 = vector.shape_cast %40 : vector<1x1x128xf32> to vector<128xf32>
    %c2_48 = arith.constant 2 : index
    %c4_49 = arith.constant 4 : index
    %c0_50 = arith.constant 0 : index
    %42 = vector.load %arg4[%c2_48, %c4_49, %c0_50] : memref<7x7x128xf32, #tpu.memory_space<vmem>>, vector<1x1x128xf32>
    %43 = vector.shape_cast %42 : vector<1x1x128xf32> to vector<128xf32>
    %c2_51 = arith.constant 2 : index
    %c5_52 = arith.constant 5 : index
    %c0_53 = arith.constant 0 : index
    %44 = vector.load %arg4[%c2_51, %c5_52, %c0_53] : memref<7x7x128xf32, #tpu.memory_space<vmem>>, vector<1x1x128xf32>
    %45 = vector.shape_cast %44 : vector<1x1x128xf32> to vector<128xf32>
    %c2_54 = arith.constant 2 : index
    %c6_55 = arith.constant 6 : index
    %c0_56 = arith.constant 0 : index
    %46 = vector.load %arg4[%c2_54, %c6_55, %c0_56] : memref<7x7x128xf32, #tpu.memory_space<vmem>>, vector<1x1x128xf32>
    %47 = vector.shape_cast %46 : vector<1x1x128xf32> to vector<128xf32>
    %c3_57 = arith.constant 3 : index
    %c0_58 = arith.constant 0 : index
    %c0_59 = arith.constant 0 : index
    %48 = vector.load %arg4[%c3_57, %c0_58, %c0_59] : memref<7x7x128xf32, #tpu.memory_space<vmem>>, vector<1x1x128xf32>
    %49 = vector.shape_cast %48 : vector<1x1x128xf32> to vector<128xf32>
    %c3_60 = arith.constant 3 : index
    %c1_61 = arith.constant 1 : index
    %c0_62 = arith.constant 0 : index
    %50 = vector.load %arg4[%c3_60, %c1_61, %c0_62] : memref<7x7x128xf32, #tpu.memory_space<vmem>>, vector<1x1x128xf32>
    %51 = vector.shape_cast %50 : vector<1x1x128xf32> to vector<128xf32>
    %c3_63 = arith.constant 3 : index
    %c2_64 = arith.constant 2 : index
    %c0_65 = arith.constant 0 : index
    %52 = vector.load %arg4[%c3_63, %c2_64, %c0_65] : memref<7x7x128xf32, #tpu.memory_space<vmem>>, vector<1x1x128xf32>
    %53 = vector.shape_cast %52 : vector<1x1x128xf32> to vector<128xf32>
    %c3_66 = arith.constant 3 : index
    %c3_67 = arith.constant 3 : index
    %c0_68 = arith.constant 0 : index
    %54 = vector.load %arg4[%c3_66, %c3_67, %c0_68] : memref<7x7x128xf32, #tpu.memory_space<vmem>>, vector<1x1x128xf32>
    %55 = vector.shape_cast %54 : vector<1x1x128xf32> to vector<128xf32>
    %c3_69 = arith.constant 3 : index
    %c4_70 = arith.constant 4 : index
    %c0_71 = arith.constant 0 : index
    %56 = vector.load %arg4[%c3_69, %c4_70, %c0_71] : memref<7x7x128xf32, #tpu.memory_space<vmem>>, vector<1x1x128xf32>
    %57 = vector.shape_cast %56 : vector<1x1x128xf32> to vector<128xf32>
    %c3_72 = arith.constant 3 : index
    %c5_73 = arith.constant 5 : index
    %c0_74 = arith.constant 0 : index
    %58 = vector.load %arg4[%c3_72, %c5_73, %c0_74] : memref<7x7x128xf32, #tpu.memory_space<vmem>>, vector<1x1x128xf32>
    %59 = vector.shape_cast %58 : vector<1x1x128xf32> to vector<128xf32>
    %c3_75 = arith.constant 3 : index
    %c6_76 = arith.constant 6 : index
    %c0_77 = arith.constant 0 : index
    %60 = vector.load %arg4[%c3_75, %c6_76, %c0_77] : memref<7x7x128xf32, #tpu.memory_space<vmem>>, vector<1x1x128xf32>
    %61 = vector.shape_cast %60 : vector<1x1x128xf32> to vector<128xf32>
    %c4_78 = arith.constant 4 : index
    %c0_79 = arith.constant 0 : index
    %c0_80 = arith.constant 0 : index
    %62 = vector.load %arg4[%c4_78, %c0_79, %c0_80] : memref<7x7x128xf32, #tpu.memory_space<vmem>>, vector<1x1x128xf32>
    %63 = vector.shape_cast %62 : vector<1x1x128xf32> to vector<128xf32>
    %c4_81 = arith.constant 4 : index
    %c1_82 = arith.constant 1 : index
    %c0_83 = arith.constant 0 : index
    %64 = vector.load %arg4[%c4_81, %c1_82, %c0_83] : memref<7x7x128xf32, #tpu.memory_space<vmem>>, vector<1x1x128xf32>
    %65 = vector.shape_cast %64 : vector<1x1x128xf32> to vector<128xf32>
    %c4_84 = arith.constant 4 : index
    %c2_85 = arith.constant 2 : index
    %c0_86 = arith.constant 0 : index
    %66 = vector.load %arg4[%c4_84, %c2_85, %c0_86] : memref<7x7x128xf32, #tpu.memory_space<vmem>>, vector<1x1x128xf32>
    %67 = vector.shape_cast %66 : vector<1x1x128xf32> to vector<128xf32>
    %c4_87 = arith.constant 4 : index
    %c3_88 = arith.constant 3 : index
    %c0_89 = arith.constant 0 : index
    %68 = vector.load %arg4[%c4_87, %c3_88, %c0_89] : memref<7x7x128xf32, #tpu.memory_space<vmem>>, vector<1x1x128xf32>
    %69 = vector.shape_cast %68 : vector<1x1x128xf32> to vector<128xf32>
    %c4_90 = arith.constant 4 : index
    %c4_91 = arith.constant 4 : index
    %c0_92 = arith.constant 0 : index
    %70 = vector.load %arg4[%c4_90, %c4_91, %c0_92] : memref<7x7x128xf32, #tpu.memory_space<vmem>>, vector<1x1x128xf32>
    %71 = vector.shape_cast %70 : vector<1x1x128xf32> to vector<128xf32>
    %c4_93 = arith.constant 4 : index
    %c5_94 = arith.constant 5 : index
    %c0_95 = arith.constant 0 : index
    %72 = vector.load %arg4[%c4_93, %c5_94, %c0_95] : memref<7x7x128xf32, #tpu.memory_space<vmem>>, vector<1x1x128xf32>
    %73 = vector.shape_cast %72 : vector<1x1x128xf32> to vector<128xf32>
    %c4_96 = arith.constant 4 : index
    %c6_97 = arith.constant 6 : index
    %c0_98 = arith.constant 0 : index
    %74 = vector.load %arg4[%c4_96, %c6_97, %c0_98] : memref<7x7x128xf32, #tpu.memory_space<vmem>>, vector<1x1x128xf32>
    %75 = vector.shape_cast %74 : vector<1x1x128xf32> to vector<128xf32>
    %c5_99 = arith.constant 5 : index
    %c0_100 = arith.constant 0 : index
    %c0_101 = arith.constant 0 : index
    %76 = vector.load %arg4[%c5_99, %c0_100, %c0_101] : memref<7x7x128xf32, #tpu.memory_space<vmem>>, vector<1x1x128xf32>
    %77 = vector.shape_cast %76 : vector<1x1x128xf32> to vector<128xf32>
    %c5_102 = arith.constant 5 : index
    %c1_103 = arith.constant 1 : index
    %c0_104 = arith.constant 0 : index
    %78 = vector.load %arg4[%c5_102, %c1_103, %c0_104] : memref<7x7x128xf32, #tpu.memory_space<vmem>>, vector<1x1x128xf32>
    %79 = vector.shape_cast %78 : vector<1x1x128xf32> to vector<128xf32>
    %c5_105 = arith.constant 5 : index
    %c2_106 = arith.constant 2 : index
    %c0_107 = arith.constant 0 : index
    %80 = vector.load %arg4[%c5_105, %c2_106, %c0_107] : memref<7x7x128xf32, #tpu.memory_space<vmem>>, vector<1x1x128xf32>
    %81 = vector.shape_cast %80 : vector<1x1x128xf32> to vector<128xf32>
    %c5_108 = arith.constant 5 : index
    %c3_109 = arith.constant 3 : index
    %c0_110 = arith.constant 0 : index
    %82 = vector.load %arg4[%c5_108, %c3_109, %c0_110] : memref<7x7x128xf32, #tpu.memory_space<vmem>>, vector<1x1x128xf32>
    %83 = vector.shape_cast %82 : vector<1x1x128xf32> to vector<128xf32>
    %c5_111 = arith.constant 5 : index
    %c4_112 = arith.constant 4 : index
    %c0_113 = arith.constant 0 : index
    %84 = vector.load %arg4[%c5_111, %c4_112, %c0_113] : memref<7x7x128xf32, #tpu.memory_space<vmem>>, vector<1x1x128xf32>
    %85 = vector.shape_cast %84 : vector<1x1x128xf32> to vector<128xf32>
    %c5_114 = arith.constant 5 : index
    %c5_115 = arith.constant 5 : index
    %c0_116 = arith.constant 0 : index
    %86 = vector.load %arg4[%c5_114, %c5_115, %c0_116] : memref<7x7x128xf32, #tpu.memory_space<vmem>>, vector<1x1x128xf32>
    %87 = vector.shape_cast %86 : vector<1x1x128xf32> to vector<128xf32>
    %c5_117 = arith.constant 5 : index
    %c6_118 = arith.constant 6 : index
    %c0_119 = arith.constant 0 : index
    %88 = vector.load %arg4[%c5_117, %c6_118, %c0_119] : memref<7x7x128xf32, #tpu.memory_space<vmem>>, vector<1x1x128xf32>
    %89 = vector.shape_cast %88 : vector<1x1x128xf32> to vector<128xf32>
    %c6_120 = arith.constant 6 : index
    %c0_121 = arith.constant 0 : index
    %c0_122 = arith.constant 0 : index
    %90 = vector.load %arg4[%c6_120, %c0_121, %c0_122] : memref<7x7x128xf32, #tpu.memory_space<vmem>>, vector<1x1x128xf32>
    %91 = vector.shape_cast %90 : vector<1x1x128xf32> to vector<128xf32>
    %c6_123 = arith.constant 6 : index
    %c1_124 = arith.constant 1 : index
    %c0_125 = arith.constant 0 : index
    %92 = vector.load %arg4[%c6_123, %c1_124, %c0_125] : memref<7x7x128xf32, #tpu.memory_space<vmem>>, vector<1x1x128xf32>
    %93 = vector.shape_cast %92 : vector<1x1x128xf32> to vector<128xf32>
    %c6_126 = arith.constant 6 : index
    %c2_127 = arith.constant 2 : index
    %c0_128 = arith.constant 0 : index
    %94 = vector.load %arg4[%c6_126, %c2_127, %c0_128] : memref<7x7x128xf32, #tpu.memory_space<vmem>>, vector<1x1x128xf32>
    %95 = vector.shape_cast %94 : vector<1x1x128xf32> to vector<128xf32>
    %c6_129 = arith.constant 6 : index
    %c3_130 = arith.constant 3 : index
    %c0_131 = arith.constant 0 : index
    %96 = vector.load %arg4[%c6_129, %c3_130, %c0_131] : memref<7x7x128xf32, #tpu.memory_space<vmem>>, vector<1x1x128xf32>
    %97 = vector.shape_cast %96 : vector<1x1x128xf32> to vector<128xf32>
    %c6_132 = arith.constant 6 : index
    %c4_133 = arith.constant 4 : index
    %c0_134 = arith.constant 0 : index
    %98 = vector.load %arg4[%c6_132, %c4_133, %c0_134] : memref<7x7x128xf32, #tpu.memory_space<vmem>>, vector<1x1x128xf32>
    %99 = vector.shape_cast %98 : vector<1x1x128xf32> to vector<128xf32>
    %c6_135 = arith.constant 6 : index
    %c5_136 = arith.constant 5 : index
    %c0_137 = arith.constant 0 : index
    %100 = vector.load %arg4[%c6_135, %c5_136, %c0_137] : memref<7x7x128xf32, #tpu.memory_space<vmem>>, vector<1x1x128xf32>
    %101 = vector.shape_cast %100 : vector<1x1x128xf32> to vector<128xf32>
    %c6_138 = arith.constant 6 : index
    %c6_139 = arith.constant 6 : index
    %c0_140 = arith.constant 0 : index
    %102 = vector.load %arg4[%c6_138, %c6_139, %c0_140] : memref<7x7x128xf32, #tpu.memory_space<vmem>>, vector<1x1x128xf32>
    %103 = vector.shape_cast %102 : vector<1x1x128xf32> to vector<128xf32>
    %c0_141 = arith.constant 0 : index
    %c0_142 = arith.constant 0 : index
    %104 = vector.load %arg5[%c0_141, %c0_142] : memref<1x128xf32, #tpu.memory_space<vmem>>, vector<1x128xf32>
    %105 = vector.shape_cast %104 : vector<1x128xf32> to vector<1x1x128xf32>
    %106 = vector.shape_cast %105 : vector<1x1x128xf32> to vector<1x1x128xf32>
    %107 = vector.broadcast %106 : vector<1x1x128xf32> to vector<1x16x128xf32>
    %c0_i32_143 = arith.constant 0 : i32
    %c0_i32_144 = arith.constant 0 : i32
    %108 = tpu.memref_slice %arg3[%arg0, %0, %c0_i32_144, %2] : memref<2x22x24x128xf32, #tpu.memory_space<any>> -> memref<1x22x24x128xf32, #tpu.memory_space<any>>
    %109 = tpu.memref_slice %arg8[%c0_i32_143] : memref<1x!tpu.dma_semaphore, #tpu.memory_space<semaphore_mem>> -> memref<1x!tpu.dma_semaphore, #tpu.memory_space<semaphore_mem>>
    %110 = tpu.memref_squeeze %109 : memref<1x!tpu.dma_semaphore, #tpu.memory_space<semaphore_mem>> -> memref<!tpu.dma_semaphore, #tpu.memory_space<semaphore_mem>>
    tpu.wait_dma2 semaphore(%110 : memref<!tpu.dma_semaphore, #tpu.memory_space<semaphore_mem>>) src(%108 : memref<1x22x24x128xf32, #tpu.memory_space<any>>) dst(%arg7 : memref<1x22x24x128xf32, #tpu.memory_space<vmem>>)
    %c0_i32_145 = arith.constant 0 : i32
    %c16_i32_146 = arith.constant 16 : i32
    %111 = arith.addi %c0_i32_145, %c16_i32_146 : i32
    %c1_i32 = arith.constant 1 : i32
    scf.for %arg9 = %c0_i32_145 to %111 step %c1_i32  : i32 {
      %cst = arith.constant 0.000000e+00 : f32
      %112 = vector.broadcast %cst : f32 to vector<1x16x128xf32>
      %c0_i32_148 = arith.constant 0 : i32
      %113 = arith.addi %arg9, %c0_i32_148 : i32
      %c0_149 = arith.constant 0 : index
      %114 = arith.index_cast %113 : i32 to index
      %c0_150 = arith.constant 0 : index
      %c0_151 = arith.constant 0 : index
      %115 = vector.load %arg7[%c0_149, %114, %c0_150, %c0_151] : memref<1x22x24x128xf32, #tpu.memory_space<vmem>>, vector<1x1x16x128xf32>
      %116 = vector.shape_cast %115 : vector<1x1x16x128xf32> to vector<1x16x128xf32>
      %117 = vector.shape_cast %7 : vector<128xf32> to vector<1x1x128xf32>
      %118 = vector.broadcast %117 : vector<1x1x128xf32> to vector<1x16x128xf32>
      %119 = arith.mulf %116, %118 : vector<1x16x128xf32>
      %120 = arith.addf %107, %119 : vector<1x16x128xf32>
      %c0_i32_152 = arith.constant 0 : i32
      %121 = arith.addi %arg9, %c0_i32_152 : i32
      %c0_153 = arith.constant 0 : index
      %122 = arith.index_cast %121 : i32 to index
      %c1_154 = arith.constant 1 : index
      %c0_155 = arith.constant 0 : index
      %123 = vector.load %arg7[%c0_153, %122, %c1_154, %c0_155] : memref<1x22x24x128xf32, #tpu.memory_space<vmem>>, vector<1x1x16x128xf32>
      %124 = vector.shape_cast %123 : vector<1x1x16x128xf32> to vector<1x16x128xf32>
      %125 = vector.shape_cast %9 : vector<128xf32> to vector<1x1x128xf32>
      %126 = vector.broadcast %125 : vector<1x1x128xf32> to vector<1x16x128xf32>
      %127 = arith.mulf %124, %126 : vector<1x16x128xf32>
      %128 = arith.addf %112, %127 : vector<1x16x128xf32>
      %c0_i32_156 = arith.constant 0 : i32
      %129 = arith.addi %arg9, %c0_i32_156 : i32
      %c0_157 = arith.constant 0 : index
      %130 = arith.index_cast %129 : i32 to index
      %c2_158 = arith.constant 2 : index
      %c0_159 = arith.constant 0 : index
      %131 = vector.load %arg7[%c0_157, %130, %c2_158, %c0_159] : memref<1x22x24x128xf32, #tpu.memory_space<vmem>>, vector<1x1x16x128xf32>
      %132 = vector.shape_cast %131 : vector<1x1x16x128xf32> to vector<1x16x128xf32>
      %133 = vector.shape_cast %11 : vector<128xf32> to vector<1x1x128xf32>
      %134 = vector.broadcast %133 : vector<1x1x128xf32> to vector<1x16x128xf32>
      %135 = arith.mulf %132, %134 : vector<1x16x128xf32>
      %136 = arith.addf %120, %135 : vector<1x16x128xf32>
      %c0_i32_160 = arith.constant 0 : i32
      %137 = arith.addi %arg9, %c0_i32_160 : i32
      %c0_161 = arith.constant 0 : index
      %138 = arith.index_cast %137 : i32 to index
      %c3_162 = arith.constant 3 : index
      %c0_163 = arith.constant 0 : index
      %139 = vector.load %arg7[%c0_161, %138, %c3_162, %c0_163] : memref<1x22x24x128xf32, #tpu.memory_space<vmem>>, vector<1x1x16x128xf32>
      %140 = vector.shape_cast %139 : vector<1x1x16x128xf32> to vector<1x16x128xf32>
      %141 = vector.shape_cast %13 : vector<128xf32> to vector<1x1x128xf32>
      %142 = vector.broadcast %141 : vector<1x1x128xf32> to vector<1x16x128xf32>
      %143 = arith.mulf %140, %142 : vector<1x16x128xf32>
      %144 = arith.addf %128, %143 : vector<1x16x128xf32>
      %c0_i32_164 = arith.constant 0 : i32
      %145 = arith.addi %arg9, %c0_i32_164 : i32
      %c0_165 = arith.constant 0 : index
      %146 = arith.index_cast %145 : i32 to index
      %c4_166 = arith.constant 4 : index
      %c0_167 = arith.constant 0 : index
      %147 = vector.load %arg7[%c0_165, %146, %c4_166, %c0_167] : memref<1x22x24x128xf32, #tpu.memory_space<vmem>>, vector<1x1x16x128xf32>
      %148 = vector.shape_cast %147 : vector<1x1x16x128xf32> to vector<1x16x128xf32>
      %149 = vector.shape_cast %15 : vector<128xf32> to vector<1x1x128xf32>
      %150 = vector.broadcast %149 : vector<1x1x128xf32> to vector<1x16x128xf32>
      %151 = arith.mulf %148, %150 : vector<1x16x128xf32>
      %152 = arith.addf %136, %151 : vector<1x16x128xf32>
      %c0_i32_168 = arith.constant 0 : i32
      %153 = arith.addi %arg9, %c0_i32_168 : i32
      %c0_169 = arith.constant 0 : index
      %154 = arith.index_cast %153 : i32 to index
      %c5_170 = arith.constant 5 : index
      %c0_171 = arith.constant 0 : index
      %155 = vector.load %arg7[%c0_169, %154, %c5_170, %c0_171] : memref<1x22x24x128xf32, #tpu.memory_space<vmem>>, vector<1x1x16x128xf32>
      %156 = vector.shape_cast %155 : vector<1x1x16x128xf32> to vector<1x16x128xf32>
      %157 = vector.shape_cast %17 : vector<128xf32> to vector<1x1x128xf32>
      %158 = vector.broadcast %157 : vector<1x1x128xf32> to vector<1x16x128xf32>
      %159 = arith.mulf %156, %158 : vector<1x16x128xf32>
      %160 = arith.addf %144, %159 : vector<1x16x128xf32>
      %c0_i32_172 = arith.constant 0 : i32
      %161 = arith.addi %arg9, %c0_i32_172 : i32
      %c0_173 = arith.constant 0 : index
      %162 = arith.index_cast %161 : i32 to index
      %c6_174 = arith.constant 6 : index
      %c0_175 = arith.constant 0 : index
      %163 = vector.load %arg7[%c0_173, %162, %c6_174, %c0_175] : memref<1x22x24x128xf32, #tpu.memory_space<vmem>>, vector<1x1x16x128xf32>
      %164 = vector.shape_cast %163 : vector<1x1x16x128xf32> to vector<1x16x128xf32>
      %165 = vector.shape_cast %19 : vector<128xf32> to vector<1x1x128xf32>
      %166 = vector.broadcast %165 : vector<1x1x128xf32> to vector<1x16x128xf32>
      %167 = arith.mulf %164, %166 : vector<1x16x128xf32>
      %168 = arith.addf %152, %167 : vector<1x16x128xf32>
      %c1_i32_176 = arith.constant 1 : i32
      %169 = arith.addi %arg9, %c1_i32_176 : i32
      %c0_177 = arith.constant 0 : index
      %170 = arith.index_cast %169 : i32 to index
      %c0_178 = arith.constant 0 : index
      %c0_179 = arith.constant 0 : index
      %171 = vector.load %arg7[%c0_177, %170, %c0_178, %c0_179] : memref<1x22x24x128xf32, #tpu.memory_space<vmem>>, vector<1x1x16x128xf32>
      %172 = vector.shape_cast %171 : vector<1x1x16x128xf32> to vector<1x16x128xf32>
      %173 = vector.shape_cast %21 : vector<128xf32> to vector<1x1x128xf32>
      %174 = vector.broadcast %173 : vector<1x1x128xf32> to vector<1x16x128xf32>
      %175 = arith.mulf %172, %174 : vector<1x16x128xf32>
      %176 = arith.addf %160, %175 : vector<1x16x128xf32>
      %c1_i32_180 = arith.constant 1 : i32
      %177 = arith.addi %arg9, %c1_i32_180 : i32
      %c0_181 = arith.constant 0 : index
      %178 = arith.index_cast %177 : i32 to index
      %c1_182 = arith.constant 1 : index
      %c0_183 = arith.constant 0 : index
      %179 = vector.load %arg7[%c0_181, %178, %c1_182, %c0_183] : memref<1x22x24x128xf32, #tpu.memory_space<vmem>>, vector<1x1x16x128xf32>
      %180 = vector.shape_cast %179 : vector<1x1x16x128xf32> to vector<1x16x128xf32>
      %181 = vector.shape_cast %23 : vector<128xf32> to vector<1x1x128xf32>
      %182 = vector.broadcast %181 : vector<1x1x128xf32> to vector<1x16x128xf32>
      %183 = arith.mulf %180, %182 : vector<1x16x128xf32>
      %184 = arith.addf %168, %183 : vector<1x16x128xf32>
      %c1_i32_184 = arith.constant 1 : i32
      %185 = arith.addi %arg9, %c1_i32_184 : i32
      %c0_185 = arith.constant 0 : index
      %186 = arith.index_cast %185 : i32 to index
      %c2_186 = arith.constant 2 : index
      %c0_187 = arith.constant 0 : index
      %187 = vector.load %arg7[%c0_185, %186, %c2_186, %c0_187] : memref<1x22x24x128xf32, #tpu.memory_space<vmem>>, vector<1x1x16x128xf32>
      %188 = vector.shape_cast %187 : vector<1x1x16x128xf32> to vector<1x16x128xf32>
      %189 = vector.shape_cast %25 : vector<128xf32> to vector<1x1x128xf32>
      %190 = vector.broadcast %189 : vector<1x1x128xf32> to vector<1x16x128xf32>
      %191 = arith.mulf %188, %190 : vector<1x16x128xf32>
      %192 = arith.addf %176, %191 : vector<1x16x128xf32>
      %c1_i32_188 = arith.constant 1 : i32
      %193 = arith.addi %arg9, %c1_i32_188 : i32
      %c0_189 = arith.constant 0 : index
      %194 = arith.index_cast %193 : i32 to index
      %c3_190 = arith.constant 3 : index
      %c0_191 = arith.constant 0 : index
      %195 = vector.load %arg7[%c0_189, %194, %c3_190, %c0_191] : memref<1x22x24x128xf32, #tpu.memory_space<vmem>>, vector<1x1x16x128xf32>
      %196 = vector.shape_cast %195 : vector<1x1x16x128xf32> to vector<1x16x128xf32>
      %197 = vector.shape_cast %27 : vector<128xf32> to vector<1x1x128xf32>
      %198 = vector.broadcast %197 : vector<1x1x128xf32> to vector<1x16x128xf32>
      %199 = arith.mulf %196, %198 : vector<1x16x128xf32>
      %200 = arith.addf %184, %199 : vector<1x16x128xf32>
      %c1_i32_192 = arith.constant 1 : i32
      %201 = arith.addi %arg9, %c1_i32_192 : i32
      %c0_193 = arith.constant 0 : index
      %202 = arith.index_cast %201 : i32 to index
      %c4_194 = arith.constant 4 : index
      %c0_195 = arith.constant 0 : index
      %203 = vector.load %arg7[%c0_193, %202, %c4_194, %c0_195] : memref<1x22x24x128xf32, #tpu.memory_space<vmem>>, vector<1x1x16x128xf32>
      %204 = vector.shape_cast %203 : vector<1x1x16x128xf32> to vector<1x16x128xf32>
      %205 = vector.shape_cast %29 : vector<128xf32> to vector<1x1x128xf32>
      %206 = vector.broadcast %205 : vector<1x1x128xf32> to vector<1x16x128xf32>
      %207 = arith.mulf %204, %206 : vector<1x16x128xf32>
      %208 = arith.addf %192, %207 : vector<1x16x128xf32>
      %c1_i32_196 = arith.constant 1 : i32
      %209 = arith.addi %arg9, %c1_i32_196 : i32
      %c0_197 = arith.constant 0 : index
      %210 = arith.index_cast %209 : i32 to index
      %c5_198 = arith.constant 5 : index
      %c0_199 = arith.constant 0 : index
      %211 = vector.load %arg7[%c0_197, %210, %c5_198, %c0_199] : memref<1x22x24x128xf32, #tpu.memory_space<vmem>>, vector<1x1x16x128xf32>
      %212 = vector.shape_cast %211 : vector<1x1x16x128xf32> to vector<1x16x128xf32>
      %213 = vector.shape_cast %31 : vector<128xf32> to vector<1x1x128xf32>
      %214 = vector.broadcast %213 : vector<1x1x128xf32> to vector<1x16x128xf32>
      %215 = arith.mulf %212, %214 : vector<1x16x128xf32>
      %216 = arith.addf %200, %215 : vector<1x16x128xf32>
      %c1_i32_200 = arith.constant 1 : i32
      %217 = arith.addi %arg9, %c1_i32_200 : i32
      %c0_201 = arith.constant 0 : index
      %218 = arith.index_cast %217 : i32 to index
      %c6_202 = arith.constant 6 : index
      %c0_203 = arith.constant 0 : index
      %219 = vector.load %arg7[%c0_201, %218, %c6_202, %c0_203] : memref<1x22x24x128xf32, #tpu.memory_space<vmem>>, vector<1x1x16x128xf32>
      %220 = vector.shape_cast %219 : vector<1x1x16x128xf32> to vector<1x16x128xf32>
      %221 = vector.shape_cast %33 : vector<128xf32> to vector<1x1x128xf32>
      %222 = vector.broadcast %221 : vector<1x1x128xf32> to vector<1x16x128xf32>
      %223 = arith.mulf %220, %222 : vector<1x16x128xf32>
      %224 = arith.addf %208, %223 : vector<1x16x128xf32>
      %c2_i32 = arith.constant 2 : i32
      %225 = arith.addi %arg9, %c2_i32 : i32
      %c0_204 = arith.constant 0 : index
      %226 = arith.index_cast %225 : i32 to index
      %c0_205 = arith.constant 0 : index
      %c0_206 = arith.constant 0 : index
      %227 = vector.load %arg7[%c0_204, %226, %c0_205, %c0_206] : memref<1x22x24x128xf32, #tpu.memory_space<vmem>>, vector<1x1x16x128xf32>
      %228 = vector.shape_cast %227 : vector<1x1x16x128xf32> to vector<1x16x128xf32>
      %229 = vector.shape_cast %35 : vector<128xf32> to vector<1x1x128xf32>
      %230 = vector.broadcast %229 : vector<1x1x128xf32> to vector<1x16x128xf32>
      %231 = arith.mulf %228, %230 : vector<1x16x128xf32>
      %232 = arith.addf %216, %231 : vector<1x16x128xf32>
      %c2_i32_207 = arith.constant 2 : i32
      %233 = arith.addi %arg9, %c2_i32_207 : i32
      %c0_208 = arith.constant 0 : index
      %234 = arith.index_cast %233 : i32 to index
      %c1_209 = arith.constant 1 : index
      %c0_210 = arith.constant 0 : index
      %235 = vector.load %arg7[%c0_208, %234, %c1_209, %c0_210] : memref<1x22x24x128xf32, #tpu.memory_space<vmem>>, vector<1x1x16x128xf32>
      %236 = vector.shape_cast %235 : vector<1x1x16x128xf32> to vector<1x16x128xf32>
      %237 = vector.shape_cast %37 : vector<128xf32> to vector<1x1x128xf32>
      %238 = vector.broadcast %237 : vector<1x1x128xf32> to vector<1x16x128xf32>
      %239 = arith.mulf %236, %238 : vector<1x16x128xf32>
      %240 = arith.addf %224, %239 : vector<1x16x128xf32>
      %c2_i32_211 = arith.constant 2 : i32
      %241 = arith.addi %arg9, %c2_i32_211 : i32
      %c0_212 = arith.constant 0 : index
      %242 = arith.index_cast %241 : i32 to index
      %c2_213 = arith.constant 2 : index
      %c0_214 = arith.constant 0 : index
      %243 = vector.load %arg7[%c0_212, %242, %c2_213, %c0_214] : memref<1x22x24x128xf32, #tpu.memory_space<vmem>>, vector<1x1x16x128xf32>
      %244 = vector.shape_cast %243 : vector<1x1x16x128xf32> to vector<1x16x128xf32>
      %245 = vector.shape_cast %39 : vector<128xf32> to vector<1x1x128xf32>
      %246 = vector.broadcast %245 : vector<1x1x128xf32> to vector<1x16x128xf32>
      %247 = arith.mulf %244, %246 : vector<1x16x128xf32>
      %248 = arith.addf %232, %247 : vector<1x16x128xf32>
      %c2_i32_215 = arith.constant 2 : i32
      %249 = arith.addi %arg9, %c2_i32_215 : i32
      %c0_216 = arith.constant 0 : index
      %250 = arith.index_cast %249 : i32 to index
      %c3_217 = arith.constant 3 : index
      %c0_218 = arith.constant 0 : index
      %251 = vector.load %arg7[%c0_216, %250, %c3_217, %c0_218] : memref<1x22x24x128xf32, #tpu.memory_space<vmem>>, vector<1x1x16x128xf32>
      %252 = vector.shape_cast %251 : vector<1x1x16x128xf32> to vector<1x16x128xf32>
      %253 = vector.shape_cast %41 : vector<128xf32> to vector<1x1x128xf32>
      %254 = vector.broadcast %253 : vector<1x1x128xf32> to vector<1x16x128xf32>
      %255 = arith.mulf %252, %254 : vector<1x16x128xf32>
      %256 = arith.addf %240, %255 : vector<1x16x128xf32>
      %c2_i32_219 = arith.constant 2 : i32
      %257 = arith.addi %arg9, %c2_i32_219 : i32
      %c0_220 = arith.constant 0 : index
      %258 = arith.index_cast %257 : i32 to index
      %c4_221 = arith.constant 4 : index
      %c0_222 = arith.constant 0 : index
      %259 = vector.load %arg7[%c0_220, %258, %c4_221, %c0_222] : memref<1x22x24x128xf32, #tpu.memory_space<vmem>>, vector<1x1x16x128xf32>
      %260 = vector.shape_cast %259 : vector<1x1x16x128xf32> to vector<1x16x128xf32>
      %261 = vector.shape_cast %43 : vector<128xf32> to vector<1x1x128xf32>
      %262 = vector.broadcast %261 : vector<1x1x128xf32> to vector<1x16x128xf32>
      %263 = arith.mulf %260, %262 : vector<1x16x128xf32>
      %264 = arith.addf %248, %263 : vector<1x16x128xf32>
      %c2_i32_223 = arith.constant 2 : i32
      %265 = arith.addi %arg9, %c2_i32_223 : i32
      %c0_224 = arith.constant 0 : index
      %266 = arith.index_cast %265 : i32 to index
      %c5_225 = arith.constant 5 : index
      %c0_226 = arith.constant 0 : index
      %267 = vector.load %arg7[%c0_224, %266, %c5_225, %c0_226] : memref<1x22x24x128xf32, #tpu.memory_space<vmem>>, vector<1x1x16x128xf32>
      %268 = vector.shape_cast %267 : vector<1x1x16x128xf32> to vector<1x16x128xf32>
      %269 = vector.shape_cast %45 : vector<128xf32> to vector<1x1x128xf32>
      %270 = vector.broadcast %269 : vector<1x1x128xf32> to vector<1x16x128xf32>
      %271 = arith.mulf %268, %270 : vector<1x16x128xf32>
      %272 = arith.addf %256, %271 : vector<1x16x128xf32>
      %c2_i32_227 = arith.constant 2 : i32
      %273 = arith.addi %arg9, %c2_i32_227 : i32
      %c0_228 = arith.constant 0 : index
      %274 = arith.index_cast %273 : i32 to index
      %c6_229 = arith.constant 6 : index
      %c0_230 = arith.constant 0 : index
      %275 = vector.load %arg7[%c0_228, %274, %c6_229, %c0_230] : memref<1x22x24x128xf32, #tpu.memory_space<vmem>>, vector<1x1x16x128xf32>
      %276 = vector.shape_cast %275 : vector<1x1x16x128xf32> to vector<1x16x128xf32>
      %277 = vector.shape_cast %47 : vector<128xf32> to vector<1x1x128xf32>
      %278 = vector.broadcast %277 : vector<1x1x128xf32> to vector<1x16x128xf32>
      %279 = arith.mulf %276, %278 : vector<1x16x128xf32>
      %280 = arith.addf %264, %279 : vector<1x16x128xf32>
      %c3_i32 = arith.constant 3 : i32
      %281 = arith.addi %arg9, %c3_i32 : i32
      %c0_231 = arith.constant 0 : index
      %282 = arith.index_cast %281 : i32 to index
      %c0_232 = arith.constant 0 : index
      %c0_233 = arith.constant 0 : index
      %283 = vector.load %arg7[%c0_231, %282, %c0_232, %c0_233] : memref<1x22x24x128xf32, #tpu.memory_space<vmem>>, vector<1x1x16x128xf32>
      %284 = vector.shape_cast %283 : vector<1x1x16x128xf32> to vector<1x16x128xf32>
      %285 = vector.shape_cast %49 : vector<128xf32> to vector<1x1x128xf32>
      %286 = vector.broadcast %285 : vector<1x1x128xf32> to vector<1x16x128xf32>
      %287 = arith.mulf %284, %286 : vector<1x16x128xf32>
      %288 = arith.addf %272, %287 : vector<1x16x128xf32>
      %c3_i32_234 = arith.constant 3 : i32
      %289 = arith.addi %arg9, %c3_i32_234 : i32
      %c0_235 = arith.constant 0 : index
      %290 = arith.index_cast %289 : i32 to index
      %c1_236 = arith.constant 1 : index
      %c0_237 = arith.constant 0 : index
      %291 = vector.load %arg7[%c0_235, %290, %c1_236, %c0_237] : memref<1x22x24x128xf32, #tpu.memory_space<vmem>>, vector<1x1x16x128xf32>
      %292 = vector.shape_cast %291 : vector<1x1x16x128xf32> to vector<1x16x128xf32>
      %293 = vector.shape_cast %51 : vector<128xf32> to vector<1x1x128xf32>
      %294 = vector.broadcast %293 : vector<1x1x128xf32> to vector<1x16x128xf32>
      %295 = arith.mulf %292, %294 : vector<1x16x128xf32>
      %296 = arith.addf %280, %295 : vector<1x16x128xf32>
      %c3_i32_238 = arith.constant 3 : i32
      %297 = arith.addi %arg9, %c3_i32_238 : i32
      %c0_239 = arith.constant 0 : index
      %298 = arith.index_cast %297 : i32 to index
      %c2_240 = arith.constant 2 : index
      %c0_241 = arith.constant 0 : index
      %299 = vector.load %arg7[%c0_239, %298, %c2_240, %c0_241] : memref<1x22x24x128xf32, #tpu.memory_space<vmem>>, vector<1x1x16x128xf32>
      %300 = vector.shape_cast %299 : vector<1x1x16x128xf32> to vector<1x16x128xf32>
      %301 = vector.shape_cast %53 : vector<128xf32> to vector<1x1x128xf32>
      %302 = vector.broadcast %301 : vector<1x1x128xf32> to vector<1x16x128xf32>
      %303 = arith.mulf %300, %302 : vector<1x16x128xf32>
      %304 = arith.addf %288, %303 : vector<1x16x128xf32>
      %c3_i32_242 = arith.constant 3 : i32
      %305 = arith.addi %arg9, %c3_i32_242 : i32
      %c0_243 = arith.constant 0 : index
      %306 = arith.index_cast %305 : i32 to index
      %c3_244 = arith.constant 3 : index
      %c0_245 = arith.constant 0 : index
      %307 = vector.load %arg7[%c0_243, %306, %c3_244, %c0_245] : memref<1x22x24x128xf32, #tpu.memory_space<vmem>>, vector<1x1x16x128xf32>
      %308 = vector.shape_cast %307 : vector<1x1x16x128xf32> to vector<1x16x128xf32>
      %309 = vector.shape_cast %55 : vector<128xf32> to vector<1x1x128xf32>
      %310 = vector.broadcast %309 : vector<1x1x128xf32> to vector<1x16x128xf32>
      %311 = arith.mulf %308, %310 : vector<1x16x128xf32>
      %312 = arith.addf %296, %311 : vector<1x16x128xf32>
      %c3_i32_246 = arith.constant 3 : i32
      %313 = arith.addi %arg9, %c3_i32_246 : i32
      %c0_247 = arith.constant 0 : index
      %314 = arith.index_cast %313 : i32 to index
      %c4_248 = arith.constant 4 : index
      %c0_249 = arith.constant 0 : index
      %315 = vector.load %arg7[%c0_247, %314, %c4_248, %c0_249] : memref<1x22x24x128xf32, #tpu.memory_space<vmem>>, vector<1x1x16x128xf32>
      %316 = vector.shape_cast %315 : vector<1x1x16x128xf32> to vector<1x16x128xf32>
      %317 = vector.shape_cast %57 : vector<128xf32> to vector<1x1x128xf32>
      %318 = vector.broadcast %317 : vector<1x1x128xf32> to vector<1x16x128xf32>
      %319 = arith.mulf %316, %318 : vector<1x16x128xf32>
      %320 = arith.addf %304, %319 : vector<1x16x128xf32>
      %c3_i32_250 = arith.constant 3 : i32
      %321 = arith.addi %arg9, %c3_i32_250 : i32
      %c0_251 = arith.constant 0 : index
      %322 = arith.index_cast %321 : i32 to index
      %c5_252 = arith.constant 5 : index
      %c0_253 = arith.constant 0 : index
      %323 = vector.load %arg7[%c0_251, %322, %c5_252, %c0_253] : memref<1x22x24x128xf32, #tpu.memory_space<vmem>>, vector<1x1x16x128xf32>
      %324 = vector.shape_cast %323 : vector<1x1x16x128xf32> to vector<1x16x128xf32>
      %325 = vector.shape_cast %59 : vector<128xf32> to vector<1x1x128xf32>
      %326 = vector.broadcast %325 : vector<1x1x128xf32> to vector<1x16x128xf32>
      %327 = arith.mulf %324, %326 : vector<1x16x128xf32>
      %328 = arith.addf %312, %327 : vector<1x16x128xf32>
      %c3_i32_254 = arith.constant 3 : i32
      %329 = arith.addi %arg9, %c3_i32_254 : i32
      %c0_255 = arith.constant 0 : index
      %330 = arith.index_cast %329 : i32 to index
      %c6_256 = arith.constant 6 : index
      %c0_257 = arith.constant 0 : index
      %331 = vector.load %arg7[%c0_255, %330, %c6_256, %c0_257] : memref<1x22x24x128xf32, #tpu.memory_space<vmem>>, vector<1x1x16x128xf32>
      %332 = vector.shape_cast %331 : vector<1x1x16x128xf32> to vector<1x16x128xf32>
      %333 = vector.shape_cast %61 : vector<128xf32> to vector<1x1x128xf32>
      %334 = vector.broadcast %333 : vector<1x1x128xf32> to vector<1x16x128xf32>
      %335 = arith.mulf %332, %334 : vector<1x16x128xf32>
      %336 = arith.addf %320, %335 : vector<1x16x128xf32>
      %c4_i32 = arith.constant 4 : i32
      %337 = arith.addi %arg9, %c4_i32 : i32
      %c0_258 = arith.constant 0 : index
      %338 = arith.index_cast %337 : i32 to index
      %c0_259 = arith.constant 0 : index
      %c0_260 = arith.constant 0 : index
      %339 = vector.load %arg7[%c0_258, %338, %c0_259, %c0_260] : memref<1x22x24x128xf32, #tpu.memory_space<vmem>>, vector<1x1x16x128xf32>
      %340 = vector.shape_cast %339 : vector<1x1x16x128xf32> to vector<1x16x128xf32>
      %341 = vector.shape_cast %63 : vector<128xf32> to vector<1x1x128xf32>
      %342 = vector.broadcast %341 : vector<1x1x128xf32> to vector<1x16x128xf32>
      %343 = arith.mulf %340, %342 : vector<1x16x128xf32>
      %344 = arith.addf %328, %343 : vector<1x16x128xf32>
      %c4_i32_261 = arith.constant 4 : i32
      %345 = arith.addi %arg9, %c4_i32_261 : i32
      %c0_262 = arith.constant 0 : index
      %346 = arith.index_cast %345 : i32 to index
      %c1_263 = arith.constant 1 : index
      %c0_264 = arith.constant 0 : index
      %347 = vector.load %arg7[%c0_262, %346, %c1_263, %c0_264] : memref<1x22x24x128xf32, #tpu.memory_space<vmem>>, vector<1x1x16x128xf32>
      %348 = vector.shape_cast %347 : vector<1x1x16x128xf32> to vector<1x16x128xf32>
      %349 = vector.shape_cast %65 : vector<128xf32> to vector<1x1x128xf32>
      %350 = vector.broadcast %349 : vector<1x1x128xf32> to vector<1x16x128xf32>
      %351 = arith.mulf %348, %350 : vector<1x16x128xf32>
      %352 = arith.addf %336, %351 : vector<1x16x128xf32>
      %c4_i32_265 = arith.constant 4 : i32
      %353 = arith.addi %arg9, %c4_i32_265 : i32
      %c0_266 = arith.constant 0 : index
      %354 = arith.index_cast %353 : i32 to index
      %c2_267 = arith.constant 2 : index
      %c0_268 = arith.constant 0 : index
      %355 = vector.load %arg7[%c0_266, %354, %c2_267, %c0_268] : memref<1x22x24x128xf32, #tpu.memory_space<vmem>>, vector<1x1x16x128xf32>
      %356 = vector.shape_cast %355 : vector<1x1x16x128xf32> to vector<1x16x128xf32>
      %357 = vector.shape_cast %67 : vector<128xf32> to vector<1x1x128xf32>
      %358 = vector.broadcast %357 : vector<1x1x128xf32> to vector<1x16x128xf32>
      %359 = arith.mulf %356, %358 : vector<1x16x128xf32>
      %360 = arith.addf %344, %359 : vector<1x16x128xf32>
      %c4_i32_269 = arith.constant 4 : i32
      %361 = arith.addi %arg9, %c4_i32_269 : i32
      %c0_270 = arith.constant 0 : index
      %362 = arith.index_cast %361 : i32 to index
      %c3_271 = arith.constant 3 : index
      %c0_272 = arith.constant 0 : index
      %363 = vector.load %arg7[%c0_270, %362, %c3_271, %c0_272] : memref<1x22x24x128xf32, #tpu.memory_space<vmem>>, vector<1x1x16x128xf32>
      %364 = vector.shape_cast %363 : vector<1x1x16x128xf32> to vector<1x16x128xf32>
      %365 = vector.shape_cast %69 : vector<128xf32> to vector<1x1x128xf32>
      %366 = vector.broadcast %365 : vector<1x1x128xf32> to vector<1x16x128xf32>
      %367 = arith.mulf %364, %366 : vector<1x16x128xf32>
      %368 = arith.addf %352, %367 : vector<1x16x128xf32>
      %c4_i32_273 = arith.constant 4 : i32
      %369 = arith.addi %arg9, %c4_i32_273 : i32
      %c0_274 = arith.constant 0 : index
      %370 = arith.index_cast %369 : i32 to index
      %c4_275 = arith.constant 4 : index
      %c0_276 = arith.constant 0 : index
      %371 = vector.load %arg7[%c0_274, %370, %c4_275, %c0_276] : memref<1x22x24x128xf32, #tpu.memory_space<vmem>>, vector<1x1x16x128xf32>
      %372 = vector.shape_cast %371 : vector<1x1x16x128xf32> to vector<1x16x128xf32>
      %373 = vector.shape_cast %71 : vector<128xf32> to vector<1x1x128xf32>
      %374 = vector.broadcast %373 : vector<1x1x128xf32> to vector<1x16x128xf32>
      %375 = arith.mulf %372, %374 : vector<1x16x128xf32>
      %376 = arith.addf %360, %375 : vector<1x16x128xf32>
      %c4_i32_277 = arith.constant 4 : i32
      %377 = arith.addi %arg9, %c4_i32_277 : i32
      %c0_278 = arith.constant 0 : index
      %378 = arith.index_cast %377 : i32 to index
      %c5_279 = arith.constant 5 : index
      %c0_280 = arith.constant 0 : index
      %379 = vector.load %arg7[%c0_278, %378, %c5_279, %c0_280] : memref<1x22x24x128xf32, #tpu.memory_space<vmem>>, vector<1x1x16x128xf32>
      %380 = vector.shape_cast %379 : vector<1x1x16x128xf32> to vector<1x16x128xf32>
      %381 = vector.shape_cast %73 : vector<128xf32> to vector<1x1x128xf32>
      %382 = vector.broadcast %381 : vector<1x1x128xf32> to vector<1x16x128xf32>
      %383 = arith.mulf %380, %382 : vector<1x16x128xf32>
      %384 = arith.addf %368, %383 : vector<1x16x128xf32>
      %c4_i32_281 = arith.constant 4 : i32
      %385 = arith.addi %arg9, %c4_i32_281 : i32
      %c0_282 = arith.constant 0 : index
      %386 = arith.index_cast %385 : i32 to index
      %c6_283 = arith.constant 6 : index
      %c0_284 = arith.constant 0 : index
      %387 = vector.load %arg7[%c0_282, %386, %c6_283, %c0_284] : memref<1x22x24x128xf32, #tpu.memory_space<vmem>>, vector<1x1x16x128xf32>
      %388 = vector.shape_cast %387 : vector<1x1x16x128xf32> to vector<1x16x128xf32>
      %389 = vector.shape_cast %75 : vector<128xf32> to vector<1x1x128xf32>
      %390 = vector.broadcast %389 : vector<1x1x128xf32> to vector<1x16x128xf32>
      %391 = arith.mulf %388, %390 : vector<1x16x128xf32>
      %392 = arith.addf %376, %391 : vector<1x16x128xf32>
      %c5_i32 = arith.constant 5 : i32
      %393 = arith.addi %arg9, %c5_i32 : i32
      %c0_285 = arith.constant 0 : index
      %394 = arith.index_cast %393 : i32 to index
      %c0_286 = arith.constant 0 : index
      %c0_287 = arith.constant 0 : index
      %395 = vector.load %arg7[%c0_285, %394, %c0_286, %c0_287] : memref<1x22x24x128xf32, #tpu.memory_space<vmem>>, vector<1x1x16x128xf32>
      %396 = vector.shape_cast %395 : vector<1x1x16x128xf32> to vector<1x16x128xf32>
      %397 = vector.shape_cast %77 : vector<128xf32> to vector<1x1x128xf32>
      %398 = vector.broadcast %397 : vector<1x1x128xf32> to vector<1x16x128xf32>
      %399 = arith.mulf %396, %398 : vector<1x16x128xf32>
      %400 = arith.addf %384, %399 : vector<1x16x128xf32>
      %c5_i32_288 = arith.constant 5 : i32
      %401 = arith.addi %arg9, %c5_i32_288 : i32
      %c0_289 = arith.constant 0 : index
      %402 = arith.index_cast %401 : i32 to index
      %c1_290 = arith.constant 1 : index
      %c0_291 = arith.constant 0 : index
      %403 = vector.load %arg7[%c0_289, %402, %c1_290, %c0_291] : memref<1x22x24x128xf32, #tpu.memory_space<vmem>>, vector<1x1x16x128xf32>
      %404 = vector.shape_cast %403 : vector<1x1x16x128xf32> to vector<1x16x128xf32>
      %405 = vector.shape_cast %79 : vector<128xf32> to vector<1x1x128xf32>
      %406 = vector.broadcast %405 : vector<1x1x128xf32> to vector<1x16x128xf32>
      %407 = arith.mulf %404, %406 : vector<1x16x128xf32>
      %408 = arith.addf %392, %407 : vector<1x16x128xf32>
      %c5_i32_292 = arith.constant 5 : i32
      %409 = arith.addi %arg9, %c5_i32_292 : i32
      %c0_293 = arith.constant 0 : index
      %410 = arith.index_cast %409 : i32 to index
      %c2_294 = arith.constant 2 : index
      %c0_295 = arith.constant 0 : index
      %411 = vector.load %arg7[%c0_293, %410, %c2_294, %c0_295] : memref<1x22x24x128xf32, #tpu.memory_space<vmem>>, vector<1x1x16x128xf32>
      %412 = vector.shape_cast %411 : vector<1x1x16x128xf32> to vector<1x16x128xf32>
      %413 = vector.shape_cast %81 : vector<128xf32> to vector<1x1x128xf32>
      %414 = vector.broadcast %413 : vector<1x1x128xf32> to vector<1x16x128xf32>
      %415 = arith.mulf %412, %414 : vector<1x16x128xf32>
      %416 = arith.addf %400, %415 : vector<1x16x128xf32>
      %c5_i32_296 = arith.constant 5 : i32
      %417 = arith.addi %arg9, %c5_i32_296 : i32
      %c0_297 = arith.constant 0 : index
      %418 = arith.index_cast %417 : i32 to index
      %c3_298 = arith.constant 3 : index
      %c0_299 = arith.constant 0 : index
      %419 = vector.load %arg7[%c0_297, %418, %c3_298, %c0_299] : memref<1x22x24x128xf32, #tpu.memory_space<vmem>>, vector<1x1x16x128xf32>
      %420 = vector.shape_cast %419 : vector<1x1x16x128xf32> to vector<1x16x128xf32>
      %421 = vector.shape_cast %83 : vector<128xf32> to vector<1x1x128xf32>
      %422 = vector.broadcast %421 : vector<1x1x128xf32> to vector<1x16x128xf32>
      %423 = arith.mulf %420, %422 : vector<1x16x128xf32>
      %424 = arith.addf %408, %423 : vector<1x16x128xf32>
      %c5_i32_300 = arith.constant 5 : i32
      %425 = arith.addi %arg9, %c5_i32_300 : i32
      %c0_301 = arith.constant 0 : index
      %426 = arith.index_cast %425 : i32 to index
      %c4_302 = arith.constant 4 : index
      %c0_303 = arith.constant 0 : index
      %427 = vector.load %arg7[%c0_301, %426, %c4_302, %c0_303] : memref<1x22x24x128xf32, #tpu.memory_space<vmem>>, vector<1x1x16x128xf32>
      %428 = vector.shape_cast %427 : vector<1x1x16x128xf32> to vector<1x16x128xf32>
      %429 = vector.shape_cast %85 : vector<128xf32> to vector<1x1x128xf32>
      %430 = vector.broadcast %429 : vector<1x1x128xf32> to vector<1x16x128xf32>
      %431 = arith.mulf %428, %430 : vector<1x16x128xf32>
      %432 = arith.addf %416, %431 : vector<1x16x128xf32>
      %c5_i32_304 = arith.constant 5 : i32
      %433 = arith.addi %arg9, %c5_i32_304 : i32
      %c0_305 = arith.constant 0 : index
      %434 = arith.index_cast %433 : i32 to index
      %c5_306 = arith.constant 5 : index
      %c0_307 = arith.constant 0 : index
      %435 = vector.load %arg7[%c0_305, %434, %c5_306, %c0_307] : memref<1x22x24x128xf32, #tpu.memory_space<vmem>>, vector<1x1x16x128xf32>
      %436 = vector.shape_cast %435 : vector<1x1x16x128xf32> to vector<1x16x128xf32>
      %437 = vector.shape_cast %87 : vector<128xf32> to vector<1x1x128xf32>
      %438 = vector.broadcast %437 : vector<1x1x128xf32> to vector<1x16x128xf32>
      %439 = arith.mulf %436, %438 : vector<1x16x128xf32>
      %440 = arith.addf %424, %439 : vector<1x16x128xf32>
      %c5_i32_308 = arith.constant 5 : i32
      %441 = arith.addi %arg9, %c5_i32_308 : i32
      %c0_309 = arith.constant 0 : index
      %442 = arith.index_cast %441 : i32 to index
      %c6_310 = arith.constant 6 : index
      %c0_311 = arith.constant 0 : index
      %443 = vector.load %arg7[%c0_309, %442, %c6_310, %c0_311] : memref<1x22x24x128xf32, #tpu.memory_space<vmem>>, vector<1x1x16x128xf32>
      %444 = vector.shape_cast %443 : vector<1x1x16x128xf32> to vector<1x16x128xf32>
      %445 = vector.shape_cast %89 : vector<128xf32> to vector<1x1x128xf32>
      %446 = vector.broadcast %445 : vector<1x1x128xf32> to vector<1x16x128xf32>
      %447 = arith.mulf %444, %446 : vector<1x16x128xf32>
      %448 = arith.addf %432, %447 : vector<1x16x128xf32>
      %c6_i32 = arith.constant 6 : i32
      %449 = arith.addi %arg9, %c6_i32 : i32
      %c0_312 = arith.constant 0 : index
      %450 = arith.index_cast %449 : i32 to index
      %c0_313 = arith.constant 0 : index
      %c0_314 = arith.constant 0 : index
      %451 = vector.load %arg7[%c0_312, %450, %c0_313, %c0_314] : memref<1x22x24x128xf32, #tpu.memory_space<vmem>>, vector<1x1x16x128xf32>
      %452 = vector.shape_cast %451 : vector<1x1x16x128xf32> to vector<1x16x128xf32>
      %453 = vector.shape_cast %91 : vector<128xf32> to vector<1x1x128xf32>
      %454 = vector.broadcast %453 : vector<1x1x128xf32> to vector<1x16x128xf32>
      %455 = arith.mulf %452, %454 : vector<1x16x128xf32>
      %456 = arith.addf %440, %455 : vector<1x16x128xf32>
      %c6_i32_315 = arith.constant 6 : i32
      %457 = arith.addi %arg9, %c6_i32_315 : i32
      %c0_316 = arith.constant 0 : index
      %458 = arith.index_cast %457 : i32 to index
      %c1_317 = arith.constant 1 : index
      %c0_318 = arith.constant 0 : index
      %459 = vector.load %arg7[%c0_316, %458, %c1_317, %c0_318] : memref<1x22x24x128xf32, #tpu.memory_space<vmem>>, vector<1x1x16x128xf32>
      %460 = vector.shape_cast %459 : vector<1x1x16x128xf32> to vector<1x16x128xf32>
      %461 = vector.shape_cast %93 : vector<128xf32> to vector<1x1x128xf32>
      %462 = vector.broadcast %461 : vector<1x1x128xf32> to vector<1x16x128xf32>
      %463 = arith.mulf %460, %462 : vector<1x16x128xf32>
      %464 = arith.addf %448, %463 : vector<1x16x128xf32>
      %c6_i32_319 = arith.constant 6 : i32
      %465 = arith.addi %arg9, %c6_i32_319 : i32
      %c0_320 = arith.constant 0 : index
      %466 = arith.index_cast %465 : i32 to index
      %c2_321 = arith.constant 2 : index
      %c0_322 = arith.constant 0 : index
      %467 = vector.load %arg7[%c0_320, %466, %c2_321, %c0_322] : memref<1x22x24x128xf32, #tpu.memory_space<vmem>>, vector<1x1x16x128xf32>
      %468 = vector.shape_cast %467 : vector<1x1x16x128xf32> to vector<1x16x128xf32>
      %469 = vector.shape_cast %95 : vector<128xf32> to vector<1x1x128xf32>
      %470 = vector.broadcast %469 : vector<1x1x128xf32> to vector<1x16x128xf32>
      %471 = arith.mulf %468, %470 : vector<1x16x128xf32>
      %472 = arith.addf %456, %471 : vector<1x16x128xf32>
      %c6_i32_323 = arith.constant 6 : i32
      %473 = arith.addi %arg9, %c6_i32_323 : i32
      %c0_324 = arith.constant 0 : index
      %474 = arith.index_cast %473 : i32 to index
      %c3_325 = arith.constant 3 : index
      %c0_326 = arith.constant 0 : index
      %475 = vector.load %arg7[%c0_324, %474, %c3_325, %c0_326] : memref<1x22x24x128xf32, #tpu.memory_space<vmem>>, vector<1x1x16x128xf32>
      %476 = vector.shape_cast %475 : vector<1x1x16x128xf32> to vector<1x16x128xf32>
      %477 = vector.shape_cast %97 : vector<128xf32> to vector<1x1x128xf32>
      %478 = vector.broadcast %477 : vector<1x1x128xf32> to vector<1x16x128xf32>
      %479 = arith.mulf %476, %478 : vector<1x16x128xf32>
      %480 = arith.addf %464, %479 : vector<1x16x128xf32>
      %c6_i32_327 = arith.constant 6 : i32
      %481 = arith.addi %arg9, %c6_i32_327 : i32
      %c0_328 = arith.constant 0 : index
      %482 = arith.index_cast %481 : i32 to index
      %c4_329 = arith.constant 4 : index
      %c0_330 = arith.constant 0 : index
      %483 = vector.load %arg7[%c0_328, %482, %c4_329, %c0_330] : memref<1x22x24x128xf32, #tpu.memory_space<vmem>>, vector<1x1x16x128xf32>
      %484 = vector.shape_cast %483 : vector<1x1x16x128xf32> to vector<1x16x128xf32>
      %485 = vector.shape_cast %99 : vector<128xf32> to vector<1x1x128xf32>
      %486 = vector.broadcast %485 : vector<1x1x128xf32> to vector<1x16x128xf32>
      %487 = arith.mulf %484, %486 : vector<1x16x128xf32>
      %488 = arith.addf %472, %487 : vector<1x16x128xf32>
      %c6_i32_331 = arith.constant 6 : i32
      %489 = arith.addi %arg9, %c6_i32_331 : i32
      %c0_332 = arith.constant 0 : index
      %490 = arith.index_cast %489 : i32 to index
      %c5_333 = arith.constant 5 : index
      %c0_334 = arith.constant 0 : index
      %491 = vector.load %arg7[%c0_332, %490, %c5_333, %c0_334] : memref<1x22x24x128xf32, #tpu.memory_space<vmem>>, vector<1x1x16x128xf32>
      %492 = vector.shape_cast %491 : vector<1x1x16x128xf32> to vector<1x16x128xf32>
      %493 = vector.shape_cast %101 : vector<128xf32> to vector<1x1x128xf32>
      %494 = vector.broadcast %493 : vector<1x1x128xf32> to vector<1x16x128xf32>
      %495 = arith.mulf %492, %494 : vector<1x16x128xf32>
      %496 = arith.addf %480, %495 : vector<1x16x128xf32>
      %c6_i32_335 = arith.constant 6 : i32
      %497 = arith.addi %arg9, %c6_i32_335 : i32
      %c0_336 = arith.constant 0 : index
      %498 = arith.index_cast %497 : i32 to index
      %c6_337 = arith.constant 6 : index
      %c0_338 = arith.constant 0 : index
      %499 = vector.load %arg7[%c0_336, %498, %c6_337, %c0_338] : memref<1x22x24x128xf32, #tpu.memory_space<vmem>>, vector<1x1x16x128xf32>
      %500 = vector.shape_cast %499 : vector<1x1x16x128xf32> to vector<1x16x128xf32>
      %501 = vector.shape_cast %103 : vector<128xf32> to vector<1x1x128xf32>
      %502 = vector.broadcast %501 : vector<1x1x128xf32> to vector<1x16x128xf32>
      %503 = arith.mulf %500, %502 : vector<1x16x128xf32>
      %504 = arith.addf %488, %503 : vector<1x16x128xf32>
      %505 = arith.addf %504, %496 : vector<1x16x128xf32>
      %c0_339 = arith.constant 0 : index
      %506 = arith.index_cast %arg9 : i32 to index
      %c0_340 = arith.constant 0 : index
      %c0_341 = arith.constant 0 : index
      %507 = vector.load %arg6[%c0_339, %506, %c0_340, %c0_341] : memref<1x16x16x128xf32, #tpu.memory_space<vmem>>, vector<1x1x16x128xf32>
      %508 = vector.shape_cast %507 : vector<1x1x16x128xf32> to vector<1x16x128xf32>
      %509 = vector.shape_cast %505 : vector<1x16x128xf32> to vector<1x1x16x128xf32>
      tpu.vector_store %arg6[%c0_339, %506, %c0_340, %c0_341], %509 {strides = array<i32>} : memref<1x16x16x128xf32, #tpu.memory_space<vmem>>, vector<1x1x16x128xf32>,
    }
    %c16_i32_147 = arith.constant 16 : i32
    return
  }
  func.func @transform_1(%arg0: i32, %arg1: i32, %arg2: i32) -> (i32, i32, i32) {
    %c0_i32 = arith.constant 0 : i32
    %c0_i32_0 = arith.constant 0 : i32
    %c0_i32_1 = arith.constant 0 : i32
    return %c0_i32, %c0_i32_0, %arg1 : i32, i32, i32
  }
  func.func @transform_2(%arg0: i32, %arg1: i32, %arg2: i32) -> (i32, i32) {
    %c0_i32 = arith.constant 0 : i32
    %c0_i32_0 = arith.constant 0 : i32
    return %c0_i32, %arg1 : i32, i32
  }
  func.func @transform_3(%arg0: i32, %arg1: i32, %arg2: i32) -> (i32, i32, i32, i32) {
    %c0_i32 = arith.constant 0 : i32
    %c0_i32_0 = arith.constant 0 : i32
    return %arg0, %arg2, %c0_i32, %arg1 : i32, i32, i32, i32
  }
}

</mosaic_0001>

<llo_original>
// kernel: tpu_custom_call.1
$region0: #{tpu_custom_call.1}
  #allocation0 [shape = 'u32[]', space=smem, size = 0x4, offset = 0x4, fixed_abs, tag = 'smem constant byte address 0x4 - core index']
  #allocation1 [shape = 'u32[144,128]{1,0:T(1,128)}', space=vmem, size = 0x12000, scoped, tag = 'internal scratch']
  #allocation2 [shape = 'f32[1,22,24,128]{3,2,1,0:T(8,128)}', space=vmem, size = 0x42000, scoped, tag = 'scratch operand']
  #allocation3 [shape = 's32[1]{0}', space=sflag, size = 0x4, scoped, tag = 'scratch operand']
  #allocation8 [shape = 's32[]', space=sflag, size = 0x4, offset = 0, fixed_abs, tag = 'sflag constant byte address 0x0 - dummy sync flag']
  #allocation9 [shape = 's32[]', space=sflag, size = 0x4, offset = 0, fixed_abs, tag = 'sflag constant byte address 0x0 - dummy sync flag']
  #allocation10 [shape = 'u32[]', space=smem, size = 0x4, offset = 0x44, fixed_abs, tag = 'smem constant byte address 0x44 - assertion arg 0']
  #allocation11 [shape = 'u32[]', space=smem, size = 0x4, offset = 0x48, fixed_abs, tag = 'smem constant byte address 0x48 - assertion arg 1']
  %s0 = inlined_call_operand.hbm [shape: f32[2,22,24,128], index: 0, kind: input, shape index: {}]
  %s1 = inlined_call_operand.hbm [shape: f32[7,7,128], index: 1, kind: input, shape index: {}]
  %s2 = inlined_call_operand.vmem [shape: f32[1,128], index: 2, kind: input, shape index: {}]
  %s3 = inlined_call_operand.hbm [shape: f32[2,16,16,128], index: 3, kind: output, shape index: {}]
  %s4 = sld [smem:[#allocation0]]
  $region56: #{tpu_custom_call.1} parent=0
    _
  %s6 = ssub.s32 1, %s4
  %s7 = scalar_select 0, %s6, %s4
  $region1: #{tpu_custom_call.1} parent=0
    #allocation4 [shape = 'u8[28672]{0}', space=vmem, size = 0x7000, scoped, tag = 'input window, operand 1, single buffered']
    #allocation5 [shape = 's32[2]{0}', space=sflag, size = 0x8, scoped, tag = 'scoped memory for tpu_custom_call.1']
    #allocation6 [shape = 's32[2]{0}', space=sflag, size = 0x8, scoped, tag = 'scoped memory for tpu_custom_call.1']
    #allocation7 [shape = 'u8[262144]{0}', space=vmem, size = 0x40000, scoped, tag = 'output window, operand 0']
    %8 = vsyncpa [#allocation5], 0
    %9 = vsyncpa [#allocation6], 0
    %s10 = scalar_lea.sflag [#allocation6], 1
    %11 = vsyncpa %s10, 0
    loop: start=0, step=1, limit=4
    $region2: #{tpu_custom_call.1} parent=1 // loop_pre_header
      _
    $region3: #{tpu_custom_call.1} parent=1 // loop_header
      %s13 = sphi 0, %s17
      %p14 = scmp.ge.s32.totalorder %s13, 4
      %s20 = sphi 0, %s39
      %s21 = sphi 0, %s35
      %s22 = sphi 0, %s31
      %s23 = sphi 0, %s20
      %s24 = sphi 0, %s21
      %s25 = sphi 0, %s22
      %s26 = sphi 0, %s23
      %s27 = sphi 0, %s24
      %s28 = sphi 0, %s25
      %s42 = sphi 0, %s44
      %s45 = sphi 0, %s42
      %s46 = sphi 0, %s45
      %s62 = sphi 0, %s46
      %s68 = sphi 0, %s70
      %s71 = sphi 0, %s68
      %s72 = sphi 0, %s71
      %s88 = sphi 0, %s72
      %s98 = sphi 0, %s100
      %s101 = sphi 0, %s98
      %s102 = sphi 0, %s101
      %s118 = sphi 0, %s102
    $region4: #{tpu_custom_call.1} parent=1 // loop_header_branch
      %16 = sbr.rel (%p14) target = $region8
    $region5: #{tpu_custom_call.1} parent=1 // loop_body
      %s18 = ssub.s32 %s13, 1
      %s19 = ssub.s32 %s13, 2
      %s29 = sadd.s32 1, %s22
      %p30 = scmp.ge.s32.totalorder %s29, 1
      %s31 = scalar_select %p30, 0, %s29
      %s32 = sadd.s32 1, %s21
      %s33 = scalar_select %p30, %s32, %s21
      %p34 = scmp.ge.s32.totalorder %s33, 1
      %s35 = scalar_select %p34, 0, %s33
      %s36 = sadd.s32 1, %s20
      %s37 = scalar_select %p34, %s36, %s20
      %p38 = scmp.ge.s32.totalorder %s37, 2
      %s39 = scalar_select %p38, 0, %s37
      %s40 = ssub.s32 %s21, %s35
      %p41 = scmp.eq.s32.totalorder %s40, 0
      %s43 = sadd.s32 %s42, 1
      %s44 = scalar_select %p41, %s42, %s43
      %p47 = pneg %p41
      %p48 = scmp.eq.s32.totalorder %s13, 1
      %p49 = por %p47, %p48
      %p50 = scmp.ne.s32.totalorder %s42, %s45
      %p51 = scmp.eq.s32.totalorder %s13, 0
      %p52 = por %p50, %p51
      %p53 = scmp.ne.s32.totalorder %s42, %s45
      %p54 = scmp.eq.s32.totalorder %s18, 1
      %p55 = por %p53, %p54
      %p56 = scmp.ne.s32.totalorder %s45, %s46
      %p57 = scmp.eq.s32.totalorder %s18, 0
      %p58 = por %p56, %p57
      %p59 = scmp.ne.s32.totalorder %s45, %s46
      %p60 = scmp.eq.s32.totalorder %s19, 1
      %p61 = por %p59, %p60
      %p63 = scmp.ne.s32.totalorder %s46, %s62
      %p64 = scmp.eq.s32.totalorder %s19, 0
      %p65 = por %p63, %p64
      %s66 = ssub.s32 %s21, %s35
      %p67 = scmp.eq.s32.totalorder %s66, 0
      %s69 = sadd.s32 %s68, 1
      %s70 = scalar_select %p67, %s68, %s69
      %p73 = pneg %p67
      %p74 = scmp.eq.s32.totalorder %s13, 1
      %p75 = por %p73, %p74
      %p76 = scmp.ne.s32.totalorder %s68, %s71
      %p77 = scmp.eq.s32.totalorder %s13, 0
      %p78 = por %p76, %p77
      %p79 = scmp.ne.s32.totalorder %s68, %s71
      %p80 = scmp.eq.s32.totalorder %s18, 1
      %p81 = por %p79, %p80
      %p82 = scmp.ne.s32.totalorder %s71, %s72
      %p83 = scmp.eq.s32.totalorder %s18, 0
      %p84 = por %p82, %p83
      %p85 = scmp.ne.s32.totalorder %s71, %s72
      %p86 = scmp.eq.s32.totalorder %s19, 1
      %p87 = por %p85, %p86
      %p89 = scmp.ne.s32.totalorder %s72, %s88
      %p90 = scmp.eq.s32.totalorder %s19, 0
      %p91 = por %p89, %p90
      %s92 = ssub.s32 %s20, %s39
      %s93 = ssub.s32 %s22, %s31
      %s94 = sor.u32 %s92, %s93
      %s95 = ssub.s32 %s21, %s35
      %s96 = sor.u32 %s94, %s95
      %p97 = scmp.eq.s32.totalorder %s96, 0
      %s99 = sadd.s32 %s98, 1
      %s100 = scalar_select %p97, %s98, %s99
      %p103 = pneg %p97
      %p104 = scmp.eq.s32.totalorder %s13, 1
      %p105 = por %p103, %p104
      %p106 = scmp.ne.s32.totalorder %s98, %s101
      %p107 = scmp.eq.s32.totalorder %s13, 0
      %p108 = por %p106, %p107
      %p109 = scmp.ne.s32.totalorder %s98, %s101
      %p110 = scmp.eq.s32.totalorder %s18, 1
      %p111 = por %p109, %p110
      %p112 = scmp.ne.s32.totalorder %s101, %s102
      %p113 = scmp.eq.s32.totalorder %s18, 0
      %p114 = por %p112, %p113
      %p115 = scmp.ne.s32.totalorder %s101, %s102
      %p116 = scmp.eq.s32.totalorder %s19, 1
      %p117 = por %p115, %p116
      %p119 = scmp.ne.s32.totalorder %s102, %s118
      %p120 = scmp.eq.s32.totalorder %s19, 0
      %p121 = por %p119, %p120
      %p122 = scmp.le.s32.totalorder 1, %s13
      %p123 = scmp.lt.s32.totalorder %s13, 3
      %p124 = pnand %p122, %p123
      %p125 = pneg %p124
      // Predicated region
      $region9: #{tpu_custom_call.1} parent=5 // pred_check
        _
      $region10: #{tpu_custom_call.1} parent=5 // pred_check_branch
        %127 = sbr.rel (%p124) target = $region12
      $region11: #{tpu_custom_call.1} parent=5 // pred_region
        %s128 = ssub.s32 %s13, 1
        // Predicated region
        $region13: #{tpu_custom_call.1} parent=11 // pred_check
          %p129 = pneg %p58
        $region14: #{tpu_custom_call.1} parent=11 // pred_check_branch
          %131 = sbr.rel (%p129) target = $region16
        $region15: #{tpu_custom_call.1} parent=11 // pred_region
          %s133 = ssub.s32 896, 896
          %134 = vsyncadd [#allocation5], %s133
          %s135 = smul.addr %s24, 128
          %s136 = scalar_lea.hbm %s1, %s135
          %s137 = sshll.u32 [#allocation4], 4
          %s138 = int_to_ptr.vmem [resolvable:$true] %s137
          %143 = dma.hbm_to_vmem [thread:$0]  %s136, 896, %s138, [#allocation5], 128, 128, 8
        $region16: #{tpu_custom_call.1} parent=11 // pred_fallthru
          _
        // Predicated region
        $region17: #{tpu_custom_call.1} parent=11 // pred_check
          %p144 = pneg %p84
        $region18: #{tpu_custom_call.1} parent=11 // pred_check_branch
          %146 = sbr.rel (%p144) target = $region20
        $region19: #{tpu_custom_call.1} parent=11 // pred_region
          %p147 = scmp.lt.s32.totalorder %s24, 0
          %s148 = scalar_select %p147, %s24, 0
          %s149 = scalar_lea.vmem %s2, %s148
        $region20: #{tpu_custom_call.1} parent=11 // pred_fallthru
          _
      $region12: #{tpu_custom_call.1} parent=5 // pred_fallthru
        _
      %p150 = scmp.lt.s32.totalorder %s13, 2
      // Predicated region
      $region21: #{tpu_custom_call.1} parent=5 // pred_check
        %p151 = pneg %p150
      $region22: #{tpu_custom_call.1} parent=5 // pred_check_branch
        %153 = sbr.rel (%p151) target = $region24
      $region23: #{tpu_custom_call.1} parent=5 // pred_region
        _
      $region24: #{tpu_custom_call.1} parent=5 // pred_fallthru
        _
      %p154 = scmp.le.s32.totalorder 1, %s13
      %p155 = scmp.lt.s32.totalorder %s13, 3
      %p156 = pnand %p154, %p155
      %p157 = pneg %p156
      // Predicated region
      $region25: #{tpu_custom_call.1} parent=5 // pred_check
        _
      $region26: #{tpu_custom_call.1} parent=5 // pred_check_branch
        %159 = sbr.rel (%p156) target = $region28
      $region27: #{tpu_custom_call.1} parent=5 // pred_region
        %s160 = ssub.s32 %s13, 1
        // Predicated region
        $region29: #{tpu_custom_call.1} parent=27 // pred_check
          %p161 = pneg %p58
        $region30: #{tpu_custom_call.1} parent=27 // pred_check_branch
          %163 = sbr.rel (%p161) target = $region32
        $region31: #{tpu_custom_call.1} parent=27 // pred_region
          %164 = dma.done [#allocation5], 896
        $region32: #{tpu_custom_call.1} parent=27 // pred_fallthru
          _
        %p165 = pneg %p58
        %p166 = pneg %p55
        %p167 = scmp.lt.s32.totalorder %s24, 0
        %s168 = scalar_select %p167, %s24, 0
        %s169 = scalar_lea.vmem %s2, %s168
        %p170 = pneg %p84
        %p171 = pneg %p81
        %p172 = pneg %p114
        %p173 = pneg %p111
        %s174 = sand.u32 %s101, 1
        %s175 = scalar_lea.sflag [#allocation6], %s174
        %s176 = sand.u32 %s101, 1
        %s177 = smul.addr %s176, 256
        %s178 = scalar_lea.vmem [#allocation7], %s177
        %p179 = scmp.lt.s32.totalorder %s24, 0
        %s180 = scalar_select %p179, %s24, 0
        %s181 = scalar_lea.vmem %s2, %s180
        %s182 = smul.u32 16, %s25
        %s183 = smul.u32 %s25, 16
        %s184 = smul.u32 %s24, 128
        %s185 = sshra.s32 %s184, 7
        %s186 = sand.u32 %s184, 127
        %s187 = smul.u32 %s183, 24
        %s188 = sadd.s32 %s185, %s187
        %s189 = smul.u32 %s23, 528
        %s190 = sadd.s32 %s188, %s189
        %s191 = smul.addr %s190, 16
        %s192 = scalar_lea.hbm %s0, %s191
        // Predicated region
        $region33: #{tpu_custom_call.1} parent=27 // pred_check
          _
        $region34: #{tpu_custom_call.1} parent=27 // pred_check_branch
          %194 = sbr.rel target = $region36
        $region35: #{tpu_custom_call.1} parent=27 // pred_region
          %195 = sst [smem:[#allocation10]] [#allocation9]
          %196 = sst [smem:[#allocation11]] [#allocation8]
        $region36: #{tpu_custom_call.1} parent=27 // pred_fallthru
          _
        %198 = shalt.err (0)
        %s200 = sshll.u32 [#allocation2], 4
        %s201 = int_to_ptr.vmem [resolvable:$true] %s200
        %203 = dma.hbm_to_vmem [thread:$0]  %s192, 8448, %s201, [#allocation3]
        %v204 = vld [vmem:[#allocation4] sm:$0x1]
        %v205 = vld [vmem:[#allocation4 + $0x1] sm:$0x1]
        %v206 = vld [vmem:[#allocation4 + $0x2] sm:$0x1]
        %v207 = vld [vmem:[#allocation4 + $0x3] sm:$0x1]
        %v208 = vld [vmem:[#allocation4 + $0x4] sm:$0x1]
        %v209 = vld [vmem:[#allocation4 + $0x5] sm:$0x1]
        %v210 = vld [vmem:[#allocation4 + $0x6] sm:$0x1]
        %s211 = scalar_lea.vmem [#allocation4], 8
        %v212 = vld [vmem:[%s211] sm:$0x1]
        %v213 = vld [vmem:[%s211 + $0x1] sm:$0x1]
        %v214 = vld [vmem:[%s211 + $0x2] sm:$0x1]
        %v215 = vld [vmem:[%s211 + $0x3] sm:$0x1]
        %v216 = vld [vmem:[%s211 + $0x4] sm:$0x1]
        %v217 = vld [vmem:[%s211 + $0x5] sm:$0x1]
        %v218 = vld [vmem:[%s211 + $0x6] sm:$0x1]
        %s219 = scalar_lea.vmem [#allocation4], 16
        %v220 = vld [vmem:[%s219] sm:$0x1]
        %v221 = vld [vmem:[%s219 + $0x1] sm:$0x1]
        %v222 = vld [vmem:[%s219 + $0x2] sm:$0x1]
        %v223 = vld [vmem:[%s219 + $0x3] sm:$0x1]
        %v224 = vld [vmem:[%s219 + $0x4] sm:$0x1]
        %v225 = vld [vmem:[%s219 + $0x5] sm:$0x1]
        %v226 = vld [vmem:[%s219 + $0x6] sm:$0x1]
        %s227 = scalar_lea.vmem [#allocation4], 24
        %v228 = vld [vmem:[%s227] sm:$0x1]
        %v229 = vld [vmem:[%s227 + $0x1] sm:$0x1]
        %v230 = vld [vmem:[%s227 + $0x2] sm:$0x1]
        %v231 = vld [vmem:[%s227 + $0x3] sm:$0x1]
        %v232 = vld [vmem:[%s227 + $0x4] sm:$0x1]
        %v233 = vld [vmem:[%s227 + $0x5] sm:$0x1]
        %v234 = vld [vmem:[%s227 + $0x6] sm:$0x1]
        %s235 = scalar_lea.vmem [#allocation4], 32
        %v236 = vld [vmem:[%s235] sm:$0x1]
        %v237 = vld [vmem:[%s235 + $0x1] sm:$0x1]
        %v238 = vld [vmem:[%s235 + $0x2] sm:$0x1]
        %v239 = vld [vmem:[%s235 + $0x3] sm:$0x1]
        %v240 = vld [vmem:[%s235 + $0x4] sm:$0x1]
        %v241 = vld [vmem:[%s235 + $0x5] sm:$0x1]
        %v242 = vld [vmem:[%s235 + $0x6] sm:$0x1]
        %s243 = scalar_lea.vmem [#allocation4], 40
        %v244 = vld [vmem:[%s243] sm:$0x1]
        %v245 = vld [vmem:[%s243 + $0x1] sm:$0x1]
        %v246 = vld [vmem:[%s243 + $0x2] sm:$0x1]
        %v247 = vld [vmem:[%s243 + $0x3] sm:$0x1]
        %v248 = vld [vmem:[%s243 + $0x4] sm:$0x1]
        %v249 = vld [vmem:[%s243 + $0x5] sm:$0x1]
        %v250 = vld [vmem:[%s243 + $0x6] sm:$0x1]
        %s251 = scalar_lea.vmem [#allocation4], 48
        %v252 = vld [vmem:[%s251] sm:$0x1]
        %v253 = vld [vmem:[%s251 + $0x1] sm:$0x1]
        %v254 = vld [vmem:[%s251 + $0x2] sm:$0x1]
        %v255 = vld [vmem:[%s251 + $0x3] sm:$0x1]
        %v256 = vld [vmem:[%s251 + $0x4] sm:$0x1]
        %v257 = vld [vmem:[%s251 + $0x5] sm:$0x1]
        %v258 = vld [vmem:[%s251 + $0x6] sm:$0x1]
        %v259 = vld [vmem:[%s181] sm:$0x1]
        %v261 = vlaneseq
        %v262 = vshrl.u32 %v261, 7
        %v263 = vsub.s32 0, %v262
        %v264 = vrot.slane %v259, %v263
        %s266 = smul.u32 1, 22
        %s267 = smul.u32 %s266, 24
        %s268 = smul.u32 %s267, 1
        %s269 = sshll.u32 %s268, 4
        %270 = dma.done [#allocation3], %s269
        loop: start=0, step=1, limit=16
        $region37: #{tpu_custom_call.1} parent=27 // loop_pre_header
          _
        $region38: #{tpu_custom_call.1} parent=27 // loop_header
          %s272 = sphi 0, %s276
          %p273 = scmp.ge.s32.totalorder %s272, 16
        $region39: #{tpu_custom_call.1} parent=27 // loop_header_branch
          %275 = sbr.rel (%p273) target = $region43
        $region40: #{tpu_custom_call.1} parent=27 // loop_body
          %s277 = smul.u32 %s272, 24
          %s278 = scalar_lea.vmem [#allocation2], %s277
          %v279 = vld [vmem:[%s278] sm:$0xff]
          %v280 = vld [vmem:[%s278 + $0x8] sm:$0xff]
          %v281 = vlaneseq
          %v282 = vshrl.u32 %v281, 7
          %v283 = vsub.s32 0, %v282
          %v284 = vrot.slane %v204, %v283
          %v285 = vmul.f32 %v279, %v284
          %v286 = vmul.f32 %v280, %v284
          %v287 = vadd.f32 %v264, %v285
          %v288 = vadd.f32 %v264, %v286
          %v289 = vld [vmem:[%s278 + $0x1] sm:$0xff]
          %v290 = vld [vmem:[%s278 + $0x9] sm:$0xff]
          %v291 = vlaneseq
          %v292 = vshrl.u32 %v291, 7
          %v293 = vsub.s32 0, %v292
          %v294 = vrot.slane %v205, %v293
          %v295 = vmul.f32 %v289, %v294
          %v296 = vmul.f32 %v290, %v294
          %v297 = vadd.f32 %v295, 0.0
          %v298 = vadd.f32 %v296, 0.0
          %v299 = vld [vmem:[%s278 + $0x2] sm:$0xff]
          %v300 = vld [vmem:[%s278 + $0xa] sm:$0xff]
          %v301 = vlaneseq
          %v302 = vshrl.u32 %v301, 7
          %v303 = vsub.s32 0, %v302
          %v304 = vrot.slane %v206, %v303
          %v305 = vmul.f32 %v299, %v304
          %v306 = vmul.f32 %v300, %v304
          %v307 = vadd.f32 %v287, %v305
          %v308 = vadd.f32 %v288, %v306
          %v309 = vld [vmem:[%s278 + $0x3] sm:$0xff]
          %v310 = vld [vmem:[%s278 + $0xb] sm:$0xff]
          %v311 = vlaneseq
          %v312 = vshrl.u32 %v311, 7
          %v313 = vsub.s32 0, %v312
          %v314 = vrot.slane %v207, %v313
          %v315 = vmul.f32 %v309, %v314
          %v316 = vmul.f32 %v310, %v314
          %v317 = vadd.f32 %v297, %v315
          %v318 = vadd.f32 %v298, %v316
          %v319 = vld [vmem:[%s278 + $0x4] sm:$0xff]
          %v320 = vld [vmem:[%s278 + $0xc] sm:$0xff]
          %v321 = vlaneseq
          %v322 = vshrl.u32 %v321, 7
          %v323 = vsub.s32 0, %v322
          %v324 = vrot.slane %v208, %v323
          %v325 = vmul.f32 %v319, %v324
          %v326 = vmul.f32 %v320, %v324
          %v327 = vadd.f32 %v307, %v325
          %v328 = vadd.f32 %v308, %v326
          %v329 = vld [vmem:[%s278 + $0x5] sm:$0xff]
          %v330 = vld [vmem:[%s278 + $0xd] sm:$0xff]
          %v331 = vlaneseq
          %v332 = vshrl.u32 %v331, 7
          %v333 = vsub.s32 0, %v332
          %v334 = vrot.slane %v209, %v333
          %v335 = vmul.f32 %v329, %v334
          %v336 = vmul.f32 %v330, %v334
          %v337 = vadd.f32 %v317, %v335
          %v338 = vadd.f32 %v318, %v336
          %v339 = vld [vmem:[%s278 + $0x6] sm:$0xff]
          %v340 = vld [vmem:[%s278 + $0xe] sm:$0xff]
          %v341 = vlaneseq
          %v342 = vshrl.u32 %v341, 7
          %v343 = vsub.s32 0, %v342
          %v344 = vrot.slane %v210, %v343
          %v345 = vmul.f32 %v339, %v344
          %v346 = vmul.f32 %v340, %v344
          %v347 = vadd.f32 %v327, %v345
          %v348 = vadd.f32 %v328, %v346
          %s349 = sadd.s32 %s272, 1
          %s350 = smul.u32 %s349, 24
          %s351 = scalar_lea.vmem [#allocation2], %s350
          %v352 = vld [vmem:[%s351] sm:$0xff]
          %v353 = vld [vmem:[%s351 + $0x8] sm:$0xff]
          %v354 = vlaneseq
          %v355 = vshrl.u32 %v354, 7
          %v356 = vsub.s32 0, %v355
          %v357 = vrot.slane %v212, %v356
          %v358 = vmul.f32 %v352, %v357
          %v359 = vmul.f32 %v353, %v357
          %v360 = vadd.f32 %v337, %v358
          %v361 = vadd.f32 %v338, %v359
          %v362 = vld [vmem:[%s351 + $0x1] sm:$0xff]
          %v363 = vld [vmem:[%s351 + $0x9] sm:$0xff]
          %v364 = vlaneseq
          %v365 = vshrl.u32 %v364, 7
          %v366 = vsub.s32 0, %v365
          %v367 = vrot.slane %v213, %v366
          %v368 = vmul.f32 %v362, %v367
          %v369 = vmul.f32 %v363, %v367
          %v370 = vadd.f32 %v347, %v368
          %v371 = vadd.f32 %v348, %v369
          %v372 = vld [vmem:[%s351 + $0x2] sm:$0xff]
          %v373 = vld [vmem:[%s351 + $0xa] sm:$0xff]
          %v374 = vlaneseq
          %v375 = vshrl.u32 %v374, 7
          %v376 = vsub.s32 0, %v375
          %v377 = vrot.slane %v214, %v376
          %v378 = vmul.f32 %v372, %v377
          %v379 = vmul.f32 %v373, %v377
          %v380 = vadd.f32 %v360, %v378
          %v381 = vadd.f32 %v361, %v379
          %v382 = vld [vmem:[%s351 + $0x3] sm:$0xff]
          %v383 = vld [vmem:[%s351 + $0xb] sm:$0xff]
          %v384 = vlaneseq
          %v385 = vshrl.u32 %v384, 7
          %v386 = vsub.s32 0, %v385
          %v387 = vrot.slane %v215, %v386
          %v388 = vmul.f32 %v382, %v387
          %v389 = vmul.f32 %v383, %v387
          %v390 = vadd.f32 %v370, %v388
          %v391 = vadd.f32 %v371, %v389
          %v392 = vld [vmem:[%s351 + $0x4] sm:$0xff]
          %v393 = vld [vmem:[%s351 + $0xc] sm:$0xff]
          %v394 = vlaneseq
          %v395 = vshrl.u32 %v394, 7
          %v396 = vsub.s32 0, %v395
          %v397 = vrot.slane %v216, %v396
          %v398 = vmul.f32 %v392, %v397
          %v399 = vmul.f32 %v393, %v397
          %v400 = vadd.f32 %v380, %v398
          %v401 = vadd.f32 %v381, %v399
          %v402 = vld [vmem:[%s351 + $0x5] sm:$0xff]
          %v403 = vld [vmem:[%s351 + $0xd] sm:$0xff]
          %v404 = vlaneseq
          %v405 = vshrl.u32 %v404, 7
          %v406 = vsub.s32 0, %v405
          %v407 = vrot.slane %v217, %v406
          %v408 = vmul.f32 %v402, %v407
          %v409 = vmul.f32 %v403, %v407
          %v410 = vadd.f32 %v390, %v408
          %v411 = vadd.f32 %v391, %v409
          %v412 = vld [vmem:[%s351 + $0x6] sm:$0xff]
          %v413 = vld [vmem:[%s351 + $0xe] sm:$0xff]
          %v414 = vlaneseq
          %v415 = vshrl.u32 %v414, 7
          %v416 = vsub.s32 0, %v415
          %v417 = vrot.slane %v218, %v416
          %v418 = vmul.f32 %v412, %v417
          %v419 = vmul.f32 %v413, %v417
          %v420 = vadd.f32 %v400, %v418
          %v421 = vadd.f32 %v401, %v419
          %s422 = sadd.s32 %s272, 2
          %s423 = smul.u32 %s422, 24
          %s424 = scalar_lea.vmem [#allocation2], %s423
          %v425 = vld [vmem:[%s424] sm:$0xff]
          %v426 = vld [vmem:[%s424 + $0x8] sm:$0xff]
          %v427 = vlaneseq
          %v428 = vshrl.u32 %v427, 7
          %v429 = vsub.s32 0, %v428
          %v430 = vrot.slane %v220, %v429
          %v431 = vmul.f32 %v425, %v430
          %v432 = vmul.f32 %v426, %v430
          %v433 = vadd.f32 %v410, %v431
          %v434 = vadd.f32 %v411, %v432
          %v435 = vld [vmem:[%s424 + $0x1] sm:$0xff]
          %v436 = vld [vmem:[%s424 + $0x9] sm:$0xff]
          %v437 = vlaneseq
          %v438 = vshrl.u32 %v437, 7
          %v439 = vsub.s32 0, %v438
          %v440 = vrot.slane %v221, %v439
          %v441 = vmul.f32 %v435, %v440
          %v442 = vmul.f32 %v436, %v440
          %v443 = vadd.f32 %v420, %v441
          %v444 = vadd.f32 %v421, %v442
          %v445 = vld [vmem:[%s424 + $0x2] sm:$0xff]
          %v446 = vld [vmem:[%s424 + $0xa] sm:$0xff]
          %v447 = vlaneseq
          %v448 = vshrl.u32 %v447, 7
          %v449 = vsub.s32 0, %v448
          %v450 = vrot.slane %v222, %v449
          %v451 = vmul.f32 %v445, %v450
          %v452 = vmul.f32 %v446, %v450
          %v453 = vadd.f32 %v433, %v451
          %v454 = vadd.f32 %v434, %v452
          %v455 = vld [vmem:[%s424 + $0x3] sm:$0xff]
          %v456 = vld [vmem:[%s424 + $0xb] sm:$0xff]
          %v457 = vlaneseq
          %v458 = vshrl.u32 %v457, 7
          %v459 = vsub.s32 0, %v458
          %v460 = vrot.slane %v223, %v459
          %v461 = vmul.f32 %v455, %v460
          %v462 = vmul.f32 %v456, %v460
          %v463 = vadd.f32 %v443, %v461
          %v464 = vadd.f32 %v444, %v462
          %v465 = vld [vmem:[%s424 + $0x4] sm:$0xff]
          %v466 = vld [vmem:[%s424 + $0xc] sm:$0xff]
          %v467 = vlaneseq
          %v468 = vshrl.u32 %v467, 7
          %v469 = vsub.s32 0, %v468
          %v470 = vrot.slane %v224, %v469
          %v471 = vmul.f32 %v465, %v470
          %v472 = vmul.f32 %v466, %v470
          %v473 = vadd.f32 %v453, %v471
          %v474 = vadd.f32 %v454, %v472
          %v475 = vld [vmem:[%s424 + $0x5] sm:$0xff]
          %v476 = vld [vmem:[%s424 + $0xd] sm:$0xff]
          %v477 = vlaneseq
          %v478 = vshrl.u32 %v477, 7
          %v479 = vsub.s32 0, %v478
          %v480 = vrot.slane %v225, %v479
          %v481 = vmul.f32 %v475, %v480
          %v482 = vmul.f32 %v476, %v480
          %v483 = vadd.f32 %v463, %v481
          %v484 = vadd.f32 %v464, %v482
          %v485 = vld [vmem:[%s424 + $0x6] sm:$0xff]
          %v486 = vld [vmem:[%s424 + $0xe] sm:$0xff]
          %v487 = vlaneseq
          %v488 = vshrl.u32 %v487, 7
          %v489 = vsub.s32 0, %v488
          %v490 = vrot.slane %v226, %v489
          %v491 = vmul.f32 %v485, %v490
          %v492 = vmul.f32 %v486, %v490
          %v493 = vadd.f32 %v473, %v491
          %v494 = vadd.f32 %v474, %v492
          %s495 = sadd.s32 %s272, 3
          %s496 = smul.u32 %s495, 24
          %s497 = scalar_lea.vmem [#allocation2], %s496
          %v498 = vld [vmem:[%s497] sm:$0xff]
          %v499 = vld [vmem:[%s497 + $0x8] sm:$0xff]
          %v500 = vlaneseq
          %v501 = vshrl.u32 %v500, 7
          %v502 = vsub.s32 0, %v501
          %v503 = vrot.slane %v228, %v502
          %v504 = vmul.f32 %v498, %v503
          %v505 = vmul.f32 %v499, %v503
          %v506 = vadd.f32 %v483, %v504
          %v507 = vadd.f32 %v484, %v505
          %v508 = vld [vmem:[%s497 + $0x1] sm:$0xff]
          %v509 = vld [vmem:[%s497 + $0x9] sm:$0xff]
          %v510 = vlaneseq
          %v511 = vshrl.u32 %v510, 7
          %v512 = vsub.s32 0, %v511
          %v513 = vrot.slane %v229, %v512
          %v514 = vmul.f32 %v508, %v513
          %v515 = vmul.f32 %v509, %v513
          %v516 = vadd.f32 %v493, %v514
          %v517 = vadd.f32 %v494, %v515
          %v518 = vld [vmem:[%s497 + $0x2] sm:$0xff]
          %v519 = vld [vmem:[%s497 + $0xa] sm:$0xff]
          %v520 = vlaneseq
          %v521 = vshrl.u32 %v520, 7
          %v522 = vsub.s32 0, %v521
          %v523 = vrot.slane %v230, %v522
          %v524 = vmul.f32 %v518, %v523
          %v525 = vmul.f32 %v519, %v523
          %v526 = vadd.f32 %v506, %v524
          %v527 = vadd.f32 %v507, %v525
          %v528 = vld [vmem:[%s497 + $0x3] sm:$0xff]
          %v529 = vld [vmem:[%s497 + $0xb] sm:$0xff]
          %v530 = vlaneseq
          %v531 = vshrl.u32 %v530, 7
          %v532 = vsub.s32 0, %v531
          %v533 = vrot.slane %v231, %v532
          %v534 = vmul.f32 %v528, %v533
          %v535 = vmul.f32 %v529, %v533
          %v536 = vadd.f32 %v516, %v534
          %v537 = vadd.f32 %v517, %v535
          %v538 = vld [vmem:[%s497 + $0x4] sm:$0xff]
          %v539 = vld [vmem:[%s497 + $0xc] sm:$0xff]
          %v540 = vlaneseq
          %v541 = vshrl.u32 %v540, 7
          %v542 = vsub.s32 0, %v541
          %v543 = vrot.slane %v232, %v542
          %v544 = vmul.f32 %v538, %v543
          %v545 = vmul.f32 %v539, %v543
          %v546 = vadd.f32 %v526, %v544
          %v547 = vadd.f32 %v527, %v545
          %v548 = vld [vmem:[%s497 + $0x5] sm:$0xff]
          %v549 = vld [vmem:[%s497 + $0xd] sm:$0xff]
          %v550 = vlaneseq
          %v551 = vshrl.u32 %v550, 7
          %v552 = vsub.s32 0, %v551
          %v553 = vrot.slane %v233, %v552
          %v554 = vmul.f32 %v548, %v553
          %v555 = vmul.f32 %v549, %v553
          %v556 = vadd.f32 %v536, %v554
          %v557 = vadd.f32 %v537, %v555
          %v558 = vld [vmem:[%s497 + $0x6] sm:$0xff]
          %v559 = vld [vmem:[%s497 + $0xe] sm:$0xff]
          %v560 = vlaneseq
          %v561 = vshrl.u32 %v560, 7
          %v562 = vsub.s32 0, %v561
          %v563 = vrot.slane %v234, %v562
          %v564 = vmul.f32 %v558, %v563
          %v565 = vmul.f32 %v559, %v563
          %v566 = vadd.f32 %v546, %v564
          %v567 = vadd.f32 %v547, %v565
          %s568 = sadd.s32 %s272, 4
          %s569 = smul.u32 %s568, 24
          %s570 = scalar_lea.vmem [#allocation2], %s569
          %v571 = vld [vmem:[%s570] sm:$0xff]
          %v572 = vld [vmem:[%s570 + $0x8] sm:$0xff]
          %v573 = vlaneseq
          %v574 = vshrl.u32 %v573, 7
          %v575 = vsub.s32 0, %v574
          %v576 = vrot.slane %v236, %v575
          %v577 = vmul.f32 %v571, %v576
          %v578 = vmul.f32 %v572, %v576
          %v579 = vadd.f32 %v556, %v577
          %v580 = vadd.f32 %v557, %v578
          %v581 = vld [vmem:[%s570 + $0x1] sm:$0xff]
          %v582 = vld [vmem:[%s570 + $0x9] sm:$0xff]
          %v583 = vlaneseq
          %v584 = vshrl.u32 %v583, 7
          %v585 = vsub.s32 0, %v584
          %v586 = vrot.slane %v237, %v585
          %v587 = vmul.f32 %v581, %v586
          %v588 = vmul.f32 %v582, %v586
          %v589 = vadd.f32 %v566, %v587
          %v590 = vadd.f32 %v567, %v588
          %v591 = vld [vmem:[%s570 + $0x2] sm:$0xff]
          %v592 = vld [vmem:[%s570 + $0xa] sm:$0xff]
          %v593 = vlaneseq
          %v594 = vshrl.u32 %v593, 7
          %v595 = vsub.s32 0, %v594
          %v596 = vrot.slane %v238, %v595
          %v597 = vmul.f32 %v591, %v596
          %v598 = vmul.f32 %v592, %v596
          %v599 = vadd.f32 %v579, %v597
          %v600 = vadd.f32 %v580, %v598
          %v601 = vld [vmem:[%s570 + $0x3] sm:$0xff]
          %v602 = vld [vmem:[%s570 + $0xb] sm:$0xff]
          %v603 = vlaneseq
          %v604 = vshrl.u32 %v603, 7
          %v605 = vsub.s32 0, %v604
          %v606 = vrot.slane %v239, %v605
          %v607 = vmul.f32 %v601, %v606
          %v608 = vmul.f32 %v602, %v606
          %v609 = vadd.f32 %v589, %v607
          %v610 = vadd.f32 %v590, %v608
          %v611 = vld [vmem:[%s570 + $0x4] sm:$0xff]
          %v612 = vld [vmem:[%s570 + $0xc] sm:$0xff]
          %v613 = vlaneseq
          %v614 = vshrl.u32 %v613, 7
          %v615 = vsub.s32 0, %v614
          %v616 = vrot.slane %v240, %v615
          %v617 = vmul.f32 %v611, %v616
          %v618 = vmul.f32 %v612, %v616
          %v619 = vadd.f32 %v599, %v617
          %v620 = vadd.f32 %v600, %v618
          %v621 = vld [vmem:[%s570 + $0x5] sm:$0xff]
          %v622 = vld [vmem:[%s570 + $0xd] sm:$0xff]
          %v623 = vlaneseq
          %v624 = vshrl.u32 %v623, 7
          %v625 = vsub.s32 0, %v624
          %v626 = vrot.slane %v241, %v625
          %v627 = vmul.f32 %v621, %v626
          %v628 = vmul.f32 %v622, %v626
          %v629 = vadd.f32 %v609, %v627
          %v630 = vadd.f32 %v610, %v628
          %v631 = vld [vmem:[%s570 + $0x6] sm:$0xff]
          %v632 = vld [vmem:[%s570 + $0xe] sm:$0xff]
          %v633 = vlaneseq
          %v634 = vshrl.u32 %v633, 7
          %v635 = vsub.s32 0, %v634
          %v636 = vrot.slane %v242, %v635
          %v637 = vmul.f32 %v631, %v636
          %v638 = vmul.f32 %v632, %v636
          %v639 = vadd.f32 %v619, %v637
          %v640 = vadd.f32 %v620, %v638
          %s641 = sadd.s32 %s272, 5
          %s642 = smul.u32 %s641, 24
          %s643 = scalar_lea.vmem [#allocation2], %s642
          %v644 = vld [vmem:[%s643] sm:$0xff]
          %v645 = vld [vmem:[%s643 + $0x8] sm:$0xff]
          %v646 = vlaneseq
          %v647 = vshrl.u32 %v646, 7
          %v648 = vsub.s32 0, %v647
          %v649 = vrot.slane %v244, %v648
          %v650 = vmul.f32 %v644, %v649
          %v651 = vmul.f32 %v645, %v649
          %v652 = vadd.f32 %v629, %v650
          %v653 = vadd.f32 %v630, %v651
          %v654 = vld [vmem:[%s643 + $0x1] sm:$0xff]
          %v655 = vld [vmem:[%s643 + $0x9] sm:$0xff]
          %v656 = vlaneseq
          %v657 = vshrl.u32 %v656, 7
          %v658 = vsub.s32 0, %v657
          %v659 = vrot.slane %v245, %v658
          %v660 = vmul.f32 %v654, %v659
          %v661 = vmul.f32 %v655, %v659
          %v662 = vadd.f32 %v639, %v660
          %v663 = vadd.f32 %v640, %v661
          %v664 = vld [vmem:[%s643 + $0x2] sm:$0xff]
          %v665 = vld [vmem:[%s643 + $0xa] sm:$0xff]
          %v666 = vlaneseq
          %v667 = vshrl.u32 %v666, 7
          %v668 = vsub.s32 0, %v667
          %v669 = vrot.slane %v246, %v668
          %v670 = vmul.f32 %v664, %v669
          %v671 = vmul.f32 %v665, %v669
          %v672 = vadd.f32 %v652, %v670
          %v673 = vadd.f32 %v653, %v671
          %v674 = vld [vmem:[%s643 + $0x3] sm:$0xff]
          %v675 = vld [vmem:[%s643 + $0xb] sm:$0xff]
          %v676 = vlaneseq
          %v677 = vshrl.u32 %v676, 7
          %v678 = vsub.s32 0, %v677
          %v679 = vrot.slane %v247, %v678
          %v680 = vmul.f32 %v674, %v679
          %v681 = vmul.f32 %v675, %v679
          %v682 = vadd.f32 %v662, %v680
          %v683 = vadd.f32 %v663, %v681
          %v684 = vld [vmem:[%s643 + $0x4] sm:$0xff]
          %v685 = vld [vmem:[%s643 + $0xc] sm:$0xff]
          %v686 = vlaneseq
          %v687 = vshrl.u32 %v686, 7
          %v688 = vsub.s32 0, %v687
          %v689 = vrot.slane %v248, %v688
          %v690 = vmul.f32 %v684, %v689
          %v691 = vmul.f32 %v685, %v689
          %v692 = vadd.f32 %v672, %v690
          %v693 = vadd.f32 %v673, %v691
          %v694 = vld [vmem:[%s643 + $0x5] sm:$0xff]
          %v695 = vld [vmem:[%s643 + $0xd] sm:$0xff]
          %v696 = vlaneseq
          %v697 = vshrl.u32 %v696, 7
          %v698 = vsub.s32 0, %v697
          %v699 = vrot.slane %v249, %v698
          %v700 = vmul.f32 %v694, %v699
          %v701 = vmul.f32 %v695, %v699
          %v702 = vadd.f32 %v682, %v700
          %v703 = vadd.f32 %v683, %v701
          %v704 = vld [vmem:[%s643 + $0x6] sm:$0xff]
          %v705 = vld [vmem:[%s643 + $0xe] sm:$0xff]
          %v706 = vlaneseq
          %v707 = vshrl.u32 %v706, 7
          %v708 = vsub.s32 0, %v707
          %v709 = vrot.slane %v250, %v708
          %v710 = vmul.f32 %v704, %v709
          %v711 = vmul.f32 %v705, %v709
          %v712 = vadd.f32 %v692, %v710
          %v713 = vadd.f32 %v693, %v711
          %s714 = sadd.s32 %s272, 6
          %s715 = smul.u32 %s714, 24
          %s716 = scalar_lea.vmem [#allocation2], %s715
          %v717 = vld [vmem:[%s716] sm:$0xff]
          %v718 = vld [vmem:[%s716 + $0x8] sm:$0xff]
          %v719 = vlaneseq
          %v720 = vshrl.u32 %v719, 7
          %v721 = vsub.s32 0, %v720
          %v722 = vrot.slane %v252, %v721
          %v723 = vmul.f32 %v717, %v722
          %v724 = vmul.f32 %v718, %v722
          %v725 = vadd.f32 %v702, %v723
          %v726 = vadd.f32 %v703, %v724
          %v727 = vld [vmem:[%s716 + $0x1] sm:$0xff]
          %v728 = vld [vmem:[%s716 + $0x9] sm:$0xff]
          %v729 = vlaneseq
          %v730 = vshrl.u32 %v729, 7
          %v731 = vsub.s32 0, %v730
          %v732 = vrot.slane %v253, %v731
          %v733 = vmul.f32 %v727, %v732
          %v734 = vmul.f32 %v728, %v732
          %v735 = vadd.f32 %v712, %v733
          %v736 = vadd.f32 %v713, %v734
          %v737 = vld [vmem:[%s716 + $0x2] sm:$0xff]
          %v738 = vld [vmem:[%s716 + $0xa] sm:$0xff]
          %v739 = vlaneseq
          %v740 = vshrl.u32 %v739, 7
          %v741 = vsub.s32 0, %v740
          %v742 = vrot.slane %v254, %v741
          %v743 = vmul.f32 %v737, %v742
          %v744 = vmul.f32 %v738, %v742
          %v745 = vadd.f32 %v725, %v743
          %v746 = vadd.f32 %v726, %v744
          %v747 = vld [vmem:[%s716 + $0x3] sm:$0xff]
          %v748 = vld [vmem:[%s716 + $0xb] sm:$0xff]
          %v749 = vlaneseq
          %v750 = vshrl.u32 %v749, 7
          %v751 = vsub.s32 0, %v750
          %v752 = vrot.slane %v255, %v751
          %v753 = vmul.f32 %v747, %v752
          %v754 = vmul.f32 %v748, %v752
          %v755 = vadd.f32 %v735, %v753
          %v756 = vadd.f32 %v736, %v754
          %v757 = vld [vmem:[%s716 + $0x4] sm:$0xff]
          %v758 = vld [vmem:[%s716 + $0xc] sm:$0xff]
          %v759 = vlaneseq
          %v760 = vshrl.u32 %v759, 7
          %v761 = vsub.s32 0, %v760
          %v762 = vrot.slane %v256, %v761
          %v763 = vmul.f32 %v757, %v762
          %v764 = vmul.f32 %v758, %v762
          %v765 = vadd.f32 %v745, %v763
          %v766 = vadd.f32 %v746, %v764
          %v767 = vld [vmem:[%s716 + $0x5] sm:$0xff]
          %v768 = vld [vmem:[%s716 + $0xd] sm:$0xff]
          %v769 = vlaneseq
          %v770 = vshrl.u32 %v769, 7
          %v771 = vsub.s32 0, %v770
          %v772 = vrot.slane %v257, %v771
          %v773 = vmul.f32 %v767, %v772
          %v774 = vmul.f32 %v768, %v772
          %v775 = vadd.f32 %v755, %v773
          %v776 = vadd.f32 %v756, %v774
          %v777 = vld [vmem:[%s716 + $0x6] sm:$0xff]
          %v778 = vld [vmem:[%s716 + $0xe] sm:$0xff]
          %v779 = vlaneseq
          %v780 = vshrl.u32 %v779, 7
          %v781 = vsub.s32 0, %v780
          %v782 = vrot.slane %v258, %v781
          %v783 = vmul.f32 %v777, %v782
          %v784 = vmul.f32 %v778, %v782
          %v785 = vadd.f32 %v765, %v783
          %v786 = vadd.f32 %v766, %v784
          %v787 = vadd.f32 %v785, %v775
          %v788 = vadd.f32 %v786, %v776
          %s789 = smul.u32 %s272, 16
          %s790 = scalar_lea.vmem %s178, %s789 [#allocation7]
          %791 = vst [vmem:[%s790] sm:$0xff] %v787
          %792 = vst [vmem:[%s790 + $0x8] sm:$0xff] %v788
        $region41: #{tpu_custom_call.1} parent=27 // loop_footer
          %s276 = sadd.s32 1, %s272
        $region42: #{tpu_custom_call.1} parent=27 // loop_footer_branch
          %271 = sbr.rel target = $region38
        $region43: #{tpu_custom_call.1} parent=27 // loop_exit
          _
        %s793 = sand.u32 %s101, 1
        %s794 = scalar_lea.sflag [#allocation6], %s793
        %s795 = sand.u32 %s101, 1
        %s796 = smul.addr %s795, 256
        %s797 = scalar_lea.vmem [#allocation7], %s796
        // Predicated region
        $region44: #{tpu_custom_call.1} parent=27 // pred_check
          %p798 = pneg %p111
        $region45: #{tpu_custom_call.1} parent=27 // pred_check_branch
          %800 = sbr.rel (%p798) target = $region47
        $region46: #{tpu_custom_call.1} parent=27 // pred_region
          %s801 = smul.u32 16, %s25
          %s803 = ssub.s32 4096, 4096
          %804 = vsyncadd %s794, %s803
          %s805 = smul.addr %s801, 2
          %s806 = sadd.s32 %s24, %s805
          %s807 = smul.addr %s23, 32
          %s808 = sadd.s32 %s806, %s807
          %s809 = smul.addr %s808, 128
          %s810 = scalar_lea.hbm %s3, %s809
          %s811 = sshll.u32 %s797, 4
          %s812 = int_to_ptr.vmem [resolvable:$true] %s811
          %817 = dma.vmem_to_hbm [thread:$0]  %s812, 4096, %s810, %s794, 128, 128, 8
        $region47: #{tpu_custom_call.1} parent=27 // pred_fallthru
          _
      $region28: #{tpu_custom_call.1} parent=5 // pred_fallthru
        _
      %p818 = scmp.le.s32.totalorder 2, %s13
      // Predicated region
      $region48: #{tpu_custom_call.1} parent=5 // pred_check
        %p819 = pneg %p818
      $region49: #{tpu_custom_call.1} parent=5 // pred_check_branch
        %821 = sbr.rel (%p819) target = $region51
      $region50: #{tpu_custom_call.1} parent=5 // pred_region
        %s822 = ssub.s32 %s13, 2
        // Predicated region
        $region52: #{tpu_custom_call.1} parent=50 // pred_check
          %p823 = pneg %p117
        $region53: #{tpu_custom_call.1} parent=50 // pred_check_branch
          %825 = sbr.rel (%p823) target = $region55
        $region54: #{tpu_custom_call.1} parent=50 // pred_region
          %s826 = sand.u32 %s102, 1
          %s827 = scalar_lea.sflag [#allocation6], %s826
          %s828 = sand.u32 %s102, 1
          %s829 = smul.addr %s828, 256
          %s830 = scalar_lea.vmem [#allocation7], %s829
          %831 = dma.done %s827, 4096
        $region55: #{tpu_custom_call.1} parent=50 // pred_fallthru
          _
      $region51: #{tpu_custom_call.1} parent=5 // pred_fallthru
        _
    $region6: #{tpu_custom_call.1} parent=1 // loop_footer
      %s17 = sadd.s32 1, %s13
    $region7: #{tpu_custom_call.1} parent=1 // loop_footer_branch
      %12 = sbr.rel target = $region3
    $region8: #{tpu_custom_call.1} parent=1 // loop_exit
      _
    %832 = vsyncpa [#allocation5], 1
    %s833 = scalar_lea.sflag [#allocation5], 1
    %834 = vsyncpa %s833, 1
    %835 = vsyncpa [#allocation6], 1
    %s836 = scalar_lea.sflag [#allocation6], 1
    %837 = vsyncpa %s836, 1
  %838 = vsyncmov [#allocation3]
  %s839 = vpop.sfrf %838
  %p840 = scmp.eq.s32.totalorder %s839, 0
  %p841 = pneg %p840
  %843 = shalt.err (%p841)

</llo_original>
